<compile_context>
chip_gen: v7x
topology: tpu7x:2x2x1
jax: 0.10.0
libtpu: 0.0.40
codegen_flags: <defaults>
</compile_context>

<pallas_src>
import functools
import math

import jax
import jax.numpy as jnp
from jax.experimental import pallas as pl
from jax.experimental.pallas import tpu as pltpu

NEG_SLOPE = 0.2
EPS = 1e-5                      # torch.nn.InstanceNorm2d default eps
_VMEM_LIMIT = 32 * 1024 * 1024  # scoped VMEM limit handed to Mosaic (v7x-safe)
_VMEM_BUDGET = 24 * 1024 * 1024  # target working set (headroom under the limit)


# ----------------------------- Pallas kernel --------------------------------

def _conv_in_lrelu_kernel(p_ref, w_ref, g_ref, b_ref, o_ref, acc_ref, *, bt, pp, rc):
    """One conv-block tile.

    p_ref:   (1, Bt*P, tk)  bf16 im2col patches (Bt images packed along rows)
    w_ref:   (tk, tn)       bf16 conv-weight slice
    g_ref:   (1, tn)        f32 InstanceNorm gamma
    b_ref:   (1, tn)        f32 InstanceNorm beta
    o_ref:   (1, Bt*P, tn)  bf16 output activations (NHWC rows)
    acc_ref: (Bt*P, tn)     f32 accumulator scratch (lives across the K axis)
    """
    k = pl.program_id(2)

    @pl.when(k == 0)
    def _():
        acc_ref[...] = jnp.zeros_like(acc_ref)

    acc_ref[...] += jnp.dot(p_ref[0], w_ref[...],
                            preferred_element_type=jnp.float32)

    @pl.when(k == pl.num_programs(2) - 1)
    def _():
        gamma = g_ref[...]                                   # (1, tn)
        beta = b_ref[...]                                    # (1, tn)
        tn = acc_ref.shape[1]
        n_chunks = pp // rc
        inv_p = 1.0 / pp

        def per_image(i, carry):
            base = i * pp                                    # multiple of 8

            # Pass 1: one-pass stats (sum, sum of squares), rc rows at a time.
            def stat_body(j, c):
                s1, s2 = c
                r0 = pl.multiple_of(base + j * rc, 8)
                y = acc_ref[pl.ds(r0, rc), :]                # (rc, tn) f32
                s1 = s1 + jnp.sum(y, axis=0, keepdims=True)
                s2 = s2 + jnp.sum(y * y, axis=0, keepdims=True)
                return s1, s2

            s1, s2 = jax.lax.fori_loop(
                0, n_chunks, stat_body,
                (jnp.zeros((1, tn), jnp.float32),
                 jnp.zeros((1, tn), jnp.float32)))
            mean = s1 * inv_p
            # Clamp: one-pass variance can go slightly negative in f32.
            var = jnp.maximum(s2 * inv_p - mean * mean, 0.0)
            scale = jax.lax.rsqrt(var + EPS) * gamma         # (1, tn)
            shift = beta - mean * scale                      # (1, tn)

            # Pass 2: normalize + LeakyReLU + store, strip-mined over rc rows.
            def norm_body(j, c):
                r0 = pl.multiple_of(base + j * rc, 8)
                y = acc_ref[pl.ds(r0, rc), :]
                out = y * scale + shift
                out = jnp.where(out > 0, out, NEG_SLOPE * out)   # LeakyReLU(0.2)
                o_ref[0, pl.ds(r0, rc), :] = out.astype(o_ref.dtype)
                return c

            jax.lax.fori_loop(0, n_chunks, norm_body, 0)
            return carry

        jax.lax.fori_loop(0, bt, per_image, 0)


# ------------------------------ JAX glue -------------------------------------

def _im2col_nhwc(x, k, stride, pad):
    """x: (B, H, W, C) -> patches (B, OH*OW, k*k*C); K order = (kh, kw, c)."""
    B, H, W, C = x.shape
    if pad:
        x = jnp.pad(x, ((0, 0), (pad, pad), (pad, pad), (0, 0)))
    OH = (H + 2 * pad - k) // stride + 1
    OW = (W + 2 * pad - k) // stride + 1
    cols = []
    for i in range(k):
        for j in range(k):
            cols.append(x[:, i:i + stride * OH:stride, j:j + stride * OW:stride, :])
    p = jnp.stack(cols, axis=3)                          # (B, OH, OW, k*k, C)
    return p.reshape(B, OH * OW, k * k * C), OH, OW


def _choose_bt(batch, p, target=512):
    """Largest divisor of `batch` with bt*p <= max(target, p) (MXU row fill)."""
    bt = 1
    for d in range(1, batch + 1):
        if batch % d == 0 and d * p <= max(target, p):
            bt = d
    return bt


def _choose_tile(dim, pref):
    """Full dim if small, else largest divisor <= pref (prefer mult of 256/128/8)."""
    if dim <= pref:
        return dim
    for quantum in (256, 128, 8, 1):
        start = (pref // quantum) * quantum
        for cand in range(start, 0, -quantum):
            if dim % cand == 0:
                return cand
    return dim


def _choose_rc(pp, tn):
    """Epilogue row-chunk: ~32 KiB of f32, sublane-aligned, divides pp."""
    rc = min(pp, max(8, (32 * 1024 // (4 * tn)) // 8 * 8))
    while pp % rc:
        rc -= 8
    return max(rc, 8)


def _vmem_bytes(m, tk, tn):
    """Per-step working set: double-buffered bf16 patch/weight/out + f32 acc."""
    return 2 * (m * tk + tk * tn + m * tn) * 2 + m * tn * 4


def _conv_block(h, w, gamma, beta, *, stride=2, pad=1):
    """h: (B, H, W, Cin) bf16 NHWC -> (B, OH, OW, Cout) bf16 NHWC."""
    B = h.shape[0]
    cout, cin = w.shape[0], w.shape[1]

    # Lane-dense K feed: zero-pad Cin to a multiple of 8 so K = 16*Cin_pad is a
    # multiple of 128 (only the first block needs this; padded weights are 0).
    cin_p = -(-cin // 8) * 8
    if cin_p != cin:
        h = jnp.pad(h, ((0, 0), (0, 0), (0, 0), (0, cin_p - cin)))
        w = jnp.pad(w, ((0, 0), (0, cin_p - cin), (0, 0), (0, 0)))

    p, oh, ow = _im2col_nhwc(h, 4, stride, pad)          # (B, P, K) bf16
    P = oh * ow
    assert P % 8 == 0, f"spatial output {oh}x{ow} is not sublane-aligned"
    K = p.shape[-1]

    # Tile selection.
    tk = _choose_tile(K, 2048)
    tn = _choose_tile(cout, 512)
    bt = _choose_bt(B, P, target=512)
    # Bound patch re-reads across Cout tiles: grow tn until cout//tn <= 2.
    while (cout // tn > 2 and cout % (2 * tn) == 0
           and _vmem_bytes(bt * P, tk, 2 * tn) <= _VMEM_BUDGET):
        tn *= 2
    # v7x: keep >= 2 units of "parallel" grid work for its two TensorCores.
    if (B // bt) * (cout // tn) < 2 and bt > 1:
        bt = max(d for d in range(1, bt) if B % d == 0)
    # Safety: shrink if the working set would exceed the VMEM budget.
    while _vmem_bytes(bt * P, tk, tn) > _VMEM_BUDGET and tk > 128 and tk % 2 == 0:
        tk //= 2
    while _vmem_bytes(bt * P, tk, tn) > _VMEM_BUDGET and tn > 128 and tn % 2 == 0:
        tn //= 2
    while _vmem_bytes(bt * P, tk, tn) > _VMEM_BUDGET and bt > 1:
        bt = max(d for d in range(1, bt) if B % d == 0)

    M = bt * P
    p = p.reshape(B // bt, M, K).astype(jnp.bfloat16)
    # PyTorch weight (Cout, Cin, kH, kW) -> (kH*kW*Cin, Cout) to match patch order.
    w2d = jnp.transpose(w, (2, 3, 1, 0)).reshape(K, cout).astype(jnp.bfloat16)

    grid = (B // bt, cout // tn, K // tk)
    kernel = functools.partial(_conv_in_lrelu_kernel,
                               bt=bt, pp=P, rc=_choose_rc(P, tn))
    out = pl.pallas_call(
        kernel,
        out_shape=jax.ShapeDtypeStruct((B // bt, M, cout), jnp.bfloat16),
        grid=grid,
        in_specs=[
            pl.BlockSpec((1, M, tk), lambda g, n, k: (g, 0, k)),
            pl.BlockSpec((tk, tn), lambda g, n, k: (k, n)),
            pl.BlockSpec((1, tn), lambda g, n, k: (0, n)),
            pl.BlockSpec((1, tn), lambda g, n, k: (0, n)),
        ],
        out_specs=pl.BlockSpec((1, M, tn), lambda g, n, k: (g, 0, n)),
        scratch_shapes=[pltpu.VMEM((M, tn), jnp.float32)],
        compiler_params=pltpu.CompilerParams(
            dimension_semantics=("parallel", "parallel", "arbitrary"),
            vmem_limit_bytes=_VMEM_LIMIT),
    )(p, w2d,
      gamma.reshape(1, cout).astype(jnp.float32),
      beta.reshape(1, cout).astype(jnp.float32))
    return out.reshape(B, oh, ow, cout)


# --------------------------- Critic parameters -------------------------------

def init_critic_params(key, n_channels, image_size=64, base_filters=128):
    n_blocks = int(math.log2(image_size / 4)) - 1
    max_filters = base_filters * 2 ** n_blocks
    block_filters = [base_filters * 2 ** b for b in range(n_blocks)]
    chans = [(n_channels, base_filters)] + [(f, f * 2) for f in block_filters]
    params = {"blocks": []}
    for cin, cout in chans:
        key, kw, kg, kb = jax.random.split(key, 4)
        params["blocks"].append({
            "w": 0.05 * jax.random.normal(kw, (cout, cin, 4, 4), jnp.float32),
            "gamma": 1.0 + 0.05 * jax.random.normal(kg, (cout,), jnp.float32),
            "beta": 0.05 * jax.random.normal(kb, (cout,), jnp.float32),
        })
    key, kw, kb = jax.random.split(key, 3)
    params["final_w"] = 0.05 * jax.random.normal(kw, (1, max_filters, 4, 4), jnp.float32)
    params["final_b"] = 0.05 * jax.random.normal(kb, (1,), jnp.float32)
    return params


# ------------------------------ Forward pass ---------------------------------

def critic_forward(x, params):
    """x: (B, n_channels, H, W) NCHW float32 -> (B,) like PyTorch .view(-1)."""
    h = jnp.transpose(x, (0, 2, 3, 1)).astype(jnp.bfloat16)  # single NCHW->NHWC
    for blk in params["blocks"]:
        h = _conv_block(h, blk["w"], blk["gamma"], blk["beta"], stride=2, pad=1)
    # Final Conv2d(max_filters, 1, 4, stride=1, pad=0, bias=True): a tiny
    # (B, 16*C) x (16*C, 1) reduction -> left to XLA (out_c=1 would force
    # masked stores for ~zero MXU work in a Pallas out_spec).
    p, _, _ = _im2col_nhwc(h, 4, 1, 0)                       # (B, 1, 16*C) bf16
    wf = params["final_w"]                                   # (1, C, 4, 4)
    w2d = jnp.transpose(wf, (2, 3, 1, 0)).reshape(-1)        # (16*C,) f32
    y = jnp.einsum("bpk,k->bp", p.astype(jnp.float32), w2d)
    y = y + params["final_b"][0]
    return y.reshape(-1)


# --------------------------- Pure-JAX reference -------------------------------

def critic_forward_ref(x, params):
    def conv(x, w, stride, pad):
        return jax.lax.conv_general_dilated(
            x, w, (stride, stride), [(pad, pad), (pad, pad)],
            dimension_numbers=("NCHW", "OIHW", "NCHW"))
    for blk in params["blocks"]:
        y = conv(x, blk["w"], 2, 1)
        mean = y.mean(axis=(2, 3), keepdims=True)
        var = ((y - mean) ** 2).mean(axis=(2, 3), keepdims=True)
        y = (y - mean) / jnp.sqrt(var + EPS)
        y = y * blk["gamma"].reshape(1, -1, 1, 1) + blk["beta"].reshape(1, -1, 1, 1)
        x = jnp.where(y > 0, y, NEG_SLOPE * y)
    y = conv(x, params["final_w"], 1, 0) + params["final_b"].reshape(1, -1, 1, 1)
    return y.reshape(-1)


if __name__ == "__main__":
    key = jax.random.PRNGKey(0)
    B, n_channels, image_size, base_filters = 2, 4, 16, 8
    kx, kp = jax.random.split(key)
    x = jax.random.normal(kx, (B, n_channels, image_size, image_size), jnp.float32)
    params = init_critic_params(kp, n_channels, image_size, base_filters)

    out = jax.jit(critic_forward)(x, params)
    out = jax.block_until_ready(out)

    ref = critic_forward_ref(x, params)
    assert out.shape == (B,), out.shape
    # bf16 MXU operands + bf16 inter-block activations -> loose tolerance vs f32 ref.
    assert jnp.allclose(out, ref, atol=5e-2, rtol=5e-2), (out, ref)
    print("KERNEL_OK")
</pallas_src>

<mosaic_0001>
module attributes {stable_mosaic.version = 11 : i64} {
  func.func @_conv_in_lrelu_kernel(%arg0: i32, %arg1: i32, %arg2: i32, %arg3: memref<1x64x128xbf16, #tpu.memory_space<vmem>>, %arg4: memref<128x8xbf16, #tpu.memory_space<vmem>>, %arg5: memref<1x8xf32, #tpu.memory_space<vmem>>, %arg6: memref<1x8xf32, #tpu.memory_space<vmem>>, %arg7: memref<1x64x8xbf16, #tpu.memory_space<vmem>>, %arg8: memref<64x8xf32, #tpu.memory_space<vmem>>) attributes {dimension_semantics = [#tpu.dimension_semantics<parallel>, #tpu.dimension_semantics<parallel>, #tpu.dimension_semantics<arbitrary>], iteration_bounds = array<i64: 2, 1, 1>, scalar_prefetch = 0 : i64, scratch_operands = 1 : i64, tpu.core_type = #tpu.core_type<tc>, window_params = [{transform_indices = @transform_0, window_bounds = array<i64: 1, 64, 128>}, {transform_indices = @transform_1, window_bounds = array<i64: 128, 8>}, {transform_indices = @transform_2, window_bounds = array<i64: 1, 8>}, {transform_indices = @transform_3, window_bounds = array<i64: 1, 8>}, {transform_indices = @transform_4, window_bounds = array<i64: 1, 64, 8>}]} {
    %c0_i32 = arith.constant 0 : i32
    %0 = arith.cmpi eq, %arg2, %c0_i32 : i32
    %1 = arith.extui %0 : i1 to i32
    %c0_i32_0 = arith.constant 0 : i32
    %2 = arith.cmpi ne, %1, %c0_i32_0 : i32
    scf.if %2 {
      %cst_11 = arith.constant 0.000000e+00 : f32
      %13 = vector.broadcast %cst_11 : f32 to vector<64x8xf32>
      %c0_12 = arith.constant 0 : index
      %c0_13 = arith.constant 0 : index
      %14 = vector.load %arg8[%c0_12, %c0_13] : memref<64x8xf32, #tpu.memory_space<vmem>>, vector<64x8xf32>
      tpu.vector_store %arg8[%c0_12, %c0_13], %13 {strides = array<i32>} : memref<64x8xf32, #tpu.memory_space<vmem>>, vector<64x8xf32>,
    } else {
    }
    %c0 = arith.constant 0 : index
    %c0_1 = arith.constant 0 : index
    %3 = vector.load %arg8[%c0, %c0_1] : memref<64x8xf32, #tpu.memory_space<vmem>>, vector<64x8xf32>
    %c0_2 = arith.constant 0 : index
    %c0_3 = arith.constant 0 : index
    %c0_4 = arith.constant 0 : index
    %4 = vector.load %arg3[%c0_2, %c0_3, %c0_4] : memref<1x64x128xbf16, #tpu.memory_space<vmem>>, vector<1x64x128xbf16>
    %5 = vector.shape_cast %4 : vector<1x64x128xbf16> to vector<64x128xbf16>
    %c0_5 = arith.constant 0 : index
    %c0_6 = arith.constant 0 : index
    %6 = vector.load %arg4[%c0_5, %c0_6] : memref<128x8xbf16, #tpu.memory_space<vmem>>, vector<128x8xbf16>
    %cst = arith.constant dense<0.000000e+00> : vector<64x8xf32>
    %7 = tpu.matmul %5, %6, %cst {dimension_numbers = #tpu.dot_dimension_numbers<[1], [0], [0], [1], [0, 0, 1, 1], [], []>} : vector<64x128xbf16>, vector<128x8xbf16>, vector<64x8xf32> -> vector<64x8xf32>
    %8 = arith.addf %3, %7 : vector<64x8xf32>
    %c0_7 = arith.constant 0 : index
    %c0_8 = arith.constant 0 : index
    %9 = vector.load %arg8[%c0_7, %c0_8] : memref<64x8xf32, #tpu.memory_space<vmem>>, vector<64x8xf32>
    tpu.vector_store %arg8[%c0_7, %c0_8], %8 {strides = array<i32>} : memref<64x8xf32, #tpu.memory_space<vmem>>, vector<64x8xf32>,
    %c0_i32_9 = arith.constant 0 : i32
    %10 = arith.cmpi eq, %arg2, %c0_i32_9 : i32
    %11 = arith.extui %10 : i1 to i32
    %c0_i32_10 = arith.constant 0 : i32
    %12 = arith.cmpi ne, %11, %c0_i32_10 : i32
    scf.if %12 {
      %c0_11 = arith.constant 0 : index
      %c0_12 = arith.constant 0 : index
      %13 = vector.load %arg5[%c0_11, %c0_12] : memref<1x8xf32, #tpu.memory_space<vmem>>, vector<1x8xf32>
      %c0_13 = arith.constant 0 : index
      %c0_14 = arith.constant 0 : index
      %14 = vector.load %arg6[%c0_13, %c0_14] : memref<1x8xf32, #tpu.memory_space<vmem>>, vector<1x8xf32>
      %c0_i32_15 = arith.constant 0 : i32
      %c64_i32 = arith.constant 64 : i32
      %15 = arith.muli %c0_i32_15, %c64_i32 : i32
      %cst_16 = arith.constant 0.000000e+00 : f32
      %16 = vector.broadcast %cst_16 : f32 to vector<1x8xf32>
      %cst_17 = arith.constant 0.000000e+00 : f32
      %17 = vector.broadcast %cst_17 : f32 to vector<1x8xf32>
      %c0_i32_18 = arith.constant 0 : i32
      %c64_i32_19 = arith.constant 64 : i32
      %18 = arith.muli %c0_i32_18, %c64_i32_19 : i32
      %19 = arith.addi %15, %18 : i32
      %20 = tpu.assume_multiple %19, 8 : i32
      %21 = arith.index_cast %20 : i32 to index
      %c0_20 = arith.constant 0 : index
      %22 = vector.load %arg8[%21, %c0_20] : memref<64x8xf32, #tpu.memory_space<vmem>>, vector<64x8xf32>
      %cst_21 = arith.constant dense<0.000000e+00> : vector<8xf32>
      %23 = vector.multi_reduction <add>, %22, %cst_21 [0] : vector<64x8xf32> to vector<8xf32>
      %24 = vector.shape_cast %23 : vector<8xf32> to vector<1x8xf32>
      %25 = arith.addf %16, %24 : vector<1x8xf32>
      %26 = arith.mulf %22, %22 : vector<64x8xf32>
      %cst_22 = arith.constant dense<0.000000e+00> : vector<8xf32>
      %27 = vector.multi_reduction <add>, %26, %cst_22 [0] : vector<64x8xf32> to vector<8xf32>
      %28 = vector.shape_cast %27 : vector<8xf32> to vector<1x8xf32>
      %29 = arith.addf %17, %28 : vector<1x8xf32>
      %c1_i32 = arith.constant 1 : i32
      %cst_23 = arith.constant 1.562500e-02 : f32
      %30 = vector.broadcast %cst_23 : f32 to vector<1x8xf32>
      %31 = arith.mulf %25, %30 : vector<1x8xf32>
      %cst_24 = arith.constant 1.562500e-02 : f32
      %32 = vector.broadcast %cst_24 : f32 to vector<1x8xf32>
      %33 = arith.mulf %29, %32 : vector<1x8xf32>
      %34 = arith.mulf %31, %31 : vector<1x8xf32>
      %35 = arith.subf %33, %34 : vector<1x8xf32>
      %cst_25 = arith.constant 0.000000e+00 : f32
      %36 = vector.broadcast %cst_25 : f32 to vector<1x8xf32>
      %37 = arith.maximumf %35, %36 : vector<1x8xf32>
      %cst_26 = arith.constant 9.99999974E-6 : f32
      %38 = vector.broadcast %cst_26 : f32 to vector<1x8xf32>
      %39 = arith.addf %37, %38 : vector<1x8xf32>
      %40 = math.rsqrt %39 : vector<1x8xf32>
      %41 = arith.mulf %40, %13 : vector<1x8xf32>
      %42 = arith.mulf %31, %41 : vector<1x8xf32>
      %43 = arith.subf %14, %42 : vector<1x8xf32>
      %c0_i32_27 = arith.constant 0 : i32
      %c64_i32_28 = arith.constant 64 : i32
      %44 = arith.muli %c0_i32_27, %c64_i32_28 : i32
      %45 = arith.addi %15, %44 : i32
      %46 = tpu.assume_multiple %45, 8 : i32
      %47 = arith.index_cast %46 : i32 to index
      %c0_29 = arith.constant 0 : index
      %48 = vector.load %arg8[%47, %c0_29] : memref<64x8xf32, #tpu.memory_space<vmem>>, vector<64x8xf32>
      %49 = vector.broadcast %41 : vector<1x8xf32> to vector<64x8xf32>
      %50 = arith.mulf %48, %49 : vector<64x8xf32>
      %51 = vector.broadcast %43 : vector<1x8xf32> to vector<64x8xf32>
      %52 = arith.addf %50, %51 : vector<64x8xf32>
      %cst_30 = arith.constant 0.000000e+00 : f32
      %53 = vector.broadcast %cst_30 : f32 to vector<64x8xf32>
      %54 = arith.cmpf ogt, %52, %53 : vector<64x8xf32>
      %cst_31 = arith.constant 2.000000e-01 : f32
      %55 = vector.broadcast %cst_31 : f32 to vector<64x8xf32>
      %56 = arith.mulf %55, %52 : vector<64x8xf32>
      %57 = arith.select %54, %52, %56 : vector<64x8xi1>, vector<64x8xf32>
      %58 = arith.truncf %57 : vector<64x8xf32> to vector<64x8xbf16>
      %c0_32 = arith.constant 0 : index
      %59 = arith.index_cast %46 : i32 to index
      %c0_33 = arith.constant 0 : index
      %60 = vector.load %arg7[%c0_32, %59, %c0_33] : memref<1x64x8xbf16, #tpu.memory_space<vmem>>, vector<1x64x8xbf16>
      %61 = vector.shape_cast %60 : vector<1x64x8xbf16> to vector<64x8xbf16>
      %62 = vector.shape_cast %58 : vector<64x8xbf16> to vector<1x64x8xbf16>
      tpu.vector_store %arg7[%c0_32, %59, %c0_33], %62 {strides = array<i32>} : memref<1x64x8xbf16, #tpu.memory_space<vmem>>, vector<1x64x8xbf16>,
      %c1_i32_34 = arith.constant 1 : i32
      %c1_i32_35 = arith.constant 1 : i32
    } else {
    }
    return
  }
  func.func @transform_0(%arg0: i32, %arg1: i32, %arg2: i32) -> (i32, i32, i32) {
    %c0_i32 = arith.constant 0 : i32
    %c0_i32_0 = arith.constant 0 : i32
    return %arg0, %c0_i32, %arg2 : i32, i32, i32
  }
  func.func @transform_1(%arg0: i32, %arg1: i32, %arg2: i32) -> (i32, i32) {
    %c0_i32 = arith.constant 0 : i32
    return %arg2, %arg1 : i32, i32
  }
  func.func @transform_2(%arg0: i32, %arg1: i32, %arg2: i32) -> (i32, i32) {
    %c0_i32 = arith.constant 0 : i32
    %c0_i32_0 = arith.constant 0 : i32
    return %c0_i32, %arg1 : i32, i32
  }
  func.func @transform_3(%arg0: i32, %arg1: i32, %arg2: i32) -> (i32, i32) {
    %c0_i32 = arith.constant 0 : i32
    %c0_i32_0 = arith.constant 0 : i32
    return %c0_i32, %arg1 : i32, i32
  }
  func.func @transform_4(%arg0: i32, %arg1: i32, %arg2: i32) -> (i32, i32, i32) {
    %c0_i32 = arith.constant 0 : i32
    %c0_i32_0 = arith.constant 0 : i32
    return %arg0, %c0_i32, %arg1 : i32, i32, i32
  }
}

module attributes {stable_mosaic.version = 11 : i64} {
  func.func @_conv_in_lrelu_kernel(%arg0: i32, %arg1: i32, %arg2: i32, %arg3: memref<1x16x128xbf16, #tpu.memory_space<vmem>>, %arg4: memref<128x16xbf16, #tpu.memory_space<vmem>>, %arg5: memref<1x16xf32, #tpu.memory_space<vmem>>, %arg6: memref<1x16xf32, #tpu.memory_space<vmem>>, %arg7: memref<1x16x16xbf16, #tpu.memory_space<vmem>>, %arg8: memref<16x16xf32, #tpu.memory_space<vmem>>) attributes {dimension_semantics = [#tpu.dimension_semantics<parallel>, #tpu.dimension_semantics<parallel>, #tpu.dimension_semantics<arbitrary>], iteration_bounds = array<i64: 2, 1, 1>, scalar_prefetch = 0 : i64, scratch_operands = 1 : i64, tpu.core_type = #tpu.core_type<tc>, window_params = [{transform_indices = @transform_0, window_bounds = array<i64: 1, 16, 128>}, {transform_indices = @transform_1, window_bounds = array<i64: 128, 16>}, {transform_indices = @transform_2, window_bounds = array<i64: 1, 16>}, {transform_indices = @transform_3, window_bounds = array<i64: 1, 16>}, {transform_indices = @transform_4, window_bounds = array<i64: 1, 16, 16>}]} {
    %c0_i32 = arith.constant 0 : i32
    %0 = arith.cmpi eq, %arg2, %c0_i32 : i32
    %1 = arith.extui %0 : i1 to i32
    %c0_i32_0 = arith.constant 0 : i32
    %2 = arith.cmpi ne, %1, %c0_i32_0 : i32
    scf.if %2 {
      %cst_11 = arith.constant 0.000000e+00 : f32
      %13 = vector.broadcast %cst_11 : f32 to vector<16x16xf32>
      %c0_12 = arith.constant 0 : index
      %c0_13 = arith.constant 0 : index
      %14 = vector.load %arg8[%c0_12, %c0_13] : memref<16x16xf32, #tpu.memory_space<vmem>>, vector<16x16xf32>
      tpu.vector_store %arg8[%c0_12, %c0_13], %13 {strides = array<i32>} : memref<16x16xf32, #tpu.memory_space<vmem>>, vector<16x16xf32>,
    } else {
    }
    %c0 = arith.constant 0 : index
    %c0_1 = arith.constant 0 : index
    %3 = vector.load %arg8[%c0, %c0_1] : memref<16x16xf32, #tpu.memory_space<vmem>>, vector<16x16xf32>
    %c0_2 = arith.constant 0 : index
    %c0_3 = arith.constant 0 : index
    %c0_4 = arith.constant 0 : index
    %4 = vector.load %arg3[%c0_2, %c0_3, %c0_4] : memref<1x16x128xbf16, #tpu.memory_space<vmem>>, vector<1x16x128xbf16>
    %5 = vector.shape_cast %4 : vector<1x16x128xbf16> to vector<16x128xbf16>
    %c0_5 = arith.constant 0 : index
    %c0_6 = arith.constant 0 : index
    %6 = vector.load %arg4[%c0_5, %c0_6] : memref<128x16xbf16, #tpu.memory_space<vmem>>, vector<128x16xbf16>
    %cst = arith.constant dense<0.000000e+00> : vector<16x16xf32>
    %7 = tpu.matmul %5, %6, %cst {dimension_numbers = #tpu.dot_dimension_numbers<[1], [0], [0], [1], [0, 0, 1, 1], [], []>} : vector<16x128xbf16>, vector<128x16xbf16>, vector<16x16xf32> -> vector<16x16xf32>
    %8 = arith.addf %3, %7 : vector<16x16xf32>
    %c0_7 = arith.constant 0 : index
    %c0_8 = arith.constant 0 : index
    %9 = vector.load %arg8[%c0_7, %c0_8] : memref<16x16xf32, #tpu.memory_space<vmem>>, vector<16x16xf32>
    tpu.vector_store %arg8[%c0_7, %c0_8], %8 {strides = array<i32>} : memref<16x16xf32, #tpu.memory_space<vmem>>, vector<16x16xf32>,
    %c0_i32_9 = arith.constant 0 : i32
    %10 = arith.cmpi eq, %arg2, %c0_i32_9 : i32
    %11 = arith.extui %10 : i1 to i32
    %c0_i32_10 = arith.constant 0 : i32
    %12 = arith.cmpi ne, %11, %c0_i32_10 : i32
    scf.if %12 {
      %c0_11 = arith.constant 0 : index
      %c0_12 = arith.constant 0 : index
      %13 = vector.load %arg5[%c0_11, %c0_12] : memref<1x16xf32, #tpu.memory_space<vmem>>, vector<1x16xf32>
      %c0_13 = arith.constant 0 : index
      %c0_14 = arith.constant 0 : index
      %14 = vector.load %arg6[%c0_13, %c0_14] : memref<1x16xf32, #tpu.memory_space<vmem>>, vector<1x16xf32>
      %c0_i32_15 = arith.constant 0 : i32
      %c16_i32 = arith.constant 16 : i32
      %15 = arith.muli %c0_i32_15, %c16_i32 : i32
      %cst_16 = arith.constant 0.000000e+00 : f32
      %16 = vector.broadcast %cst_16 : f32 to vector<1x16xf32>
      %cst_17 = arith.constant 0.000000e+00 : f32
      %17 = vector.broadcast %cst_17 : f32 to vector<1x16xf32>
      %c0_i32_18 = arith.constant 0 : i32
      %c16_i32_19 = arith.constant 16 : i32
      %18 = arith.muli %c0_i32_18, %c16_i32_19 : i32
      %19 = arith.addi %15, %18 : i32
      %20 = tpu.assume_multiple %19, 8 : i32
      %21 = arith.index_cast %20 : i32 to index
      %c0_20 = arith.constant 0 : index
      %22 = vector.load %arg8[%21, %c0_20] : memref<16x16xf32, #tpu.memory_space<vmem>>, vector<16x16xf32>
      %cst_21 = arith.constant dense<0.000000e+00> : vector<16xf32>
      %23 = vector.multi_reduction <add>, %22, %cst_21 [0] : vector<16x16xf32> to vector<16xf32>
      %24 = vector.shape_cast %23 : vector<16xf32> to vector<1x16xf32>
      %25 = arith.addf %16, %24 : vector<1x16xf32>
      %26 = arith.mulf %22, %22 : vector<16x16xf32>
      %cst_22 = arith.constant dense<0.000000e+00> : vector<16xf32>
      %27 = vector.multi_reduction <add>, %26, %cst_22 [0] : vector<16x16xf32> to vector<16xf32>
      %28 = vector.shape_cast %27 : vector<16xf32> to vector<1x16xf32>
      %29 = arith.addf %17, %28 : vector<1x16xf32>
      %c1_i32 = arith.constant 1 : i32
      %cst_23 = arith.constant 6.250000e-02 : f32
      %30 = vector.broadcast %cst_23 : f32 to vector<1x16xf32>
      %31 = arith.mulf %25, %30 : vector<1x16xf32>
      %cst_24 = arith.constant 6.250000e-02 : f32
      %32 = vector.broadcast %cst_24 : f32 to vector<1x16xf32>
      %33 = arith.mulf %29, %32 : vector<1x16xf32>
      %34 = arith.mulf %31, %31 : vector<1x16xf32>
      %35 = arith.subf %33, %34 : vector<1x16xf32>
      %cst_25 = arith.constant 0.000000e+00 : f32
      %36 = vector.broadcast %cst_25 : f32 to vector<1x16xf32>
      %37 = arith.maximumf %35, %36 : vector<1x16xf32>
      %cst_26 = arith.constant 9.99999974E-6 : f32
      %38 = vector.broadcast %cst_26 : f32 to vector<1x16xf32>
      %39 = arith.addf %37, %38 : vector<1x16xf32>
      %40 = math.rsqrt %39 : vector<1x16xf32>
      %41 = arith.mulf %40, %13 : vector<1x16xf32>
      %42 = arith.mulf %31, %41 : vector<1x16xf32>
      %43 = arith.subf %14, %42 : vector<1x16xf32>
      %c0_i32_27 = arith.constant 0 : i32
      %c16_i32_28 = arith.constant 16 : i32
      %44 = arith.muli %c0_i32_27, %c16_i32_28 : i32
      %45 = arith.addi %15, %44 : i32
      %46 = tpu.assume_multiple %45, 8 : i32
      %47 = arith.index_cast %46 : i32 to index
      %c0_29 = arith.constant 0 : index
      %48 = vector.load %arg8[%47, %c0_29] : memref<16x16xf32, #tpu.memory_space<vmem>>, vector<16x16xf32>
      %49 = vector.broadcast %41 : vector<1x16xf32> to vector<16x16xf32>
      %50 = arith.mulf %48, %49 : vector<16x16xf32>
      %51 = vector.broadcast %43 : vector<1x16xf32> to vector<16x16xf32>
      %52 = arith.addf %50, %51 : vector<16x16xf32>
      %cst_30 = arith.constant 0.000000e+00 : f32
      %53 = vector.broadcast %cst_30 : f32 to vector<16x16xf32>
      %54 = arith.cmpf ogt, %52, %53 : vector<16x16xf32>
      %cst_31 = arith.constant 2.000000e-01 : f32
      %55 = vector.broadcast %cst_31 : f32 to vector<16x16xf32>
      %56 = arith.mulf %55, %52 : vector<16x16xf32>
      %57 = arith.select %54, %52, %56 : vector<16x16xi1>, vector<16x16xf32>
      %58 = arith.truncf %57 : vector<16x16xf32> to vector<16x16xbf16>
      %c0_32 = arith.constant 0 : index
      %59 = arith.index_cast %46 : i32 to index
      %c0_33 = arith.constant 0 : index
      %60 = vector.load %arg7[%c0_32, %59, %c0_33] : memref<1x16x16xbf16, #tpu.memory_space<vmem>>, vector<1x16x16xbf16>
      %61 = vector.shape_cast %60 : vector<1x16x16xbf16> to vector<16x16xbf16>
      %62 = vector.shape_cast %58 : vector<16x16xbf16> to vector<1x16x16xbf16>
      tpu.vector_store %arg7[%c0_32, %59, %c0_33], %62 {strides = array<i32>} : memref<1x16x16xbf16, #tpu.memory_space<vmem>>, vector<1x16x16xbf16>,
      %c1_i32_34 = arith.constant 1 : i32
      %c1_i32_35 = arith.constant 1 : i32
    } else {
    }
    return
  }
  func.func @transform_0(%arg0: i32, %arg1: i32, %arg2: i32) -> (i32, i32, i32) {
    %c0_i32 = arith.constant 0 : i32
    %c0_i32_0 = arith.constant 0 : i32
    return %arg0, %c0_i32, %arg2 : i32, i32, i32
  }
  func.func @transform_1(%arg0: i32, %arg1: i32, %arg2: i32) -> (i32, i32) {
    %c0_i32 = arith.constant 0 : i32
    return %arg2, %arg1 : i32, i32
  }
  func.func @transform_2(%arg0: i32, %arg1: i32, %arg2: i32) -> (i32, i32) {
    %c0_i32 = arith.constant 0 : i32
    %c0_i32_0 = arith.constant 0 : i32
    return %c0_i32, %arg1 : i32, i32
  }
  func.func @transform_3(%arg0: i32, %arg1: i32, %arg2: i32) -> (i32, i32) {
    %c0_i32 = arith.constant 0 : i32
    %c0_i32_0 = arith.constant 0 : i32
    return %c0_i32, %arg1 : i32, i32
  }
  func.func @transform_4(%arg0: i32, %arg1: i32, %arg2: i32) -> (i32, i32, i32) {
    %c0_i32 = arith.constant 0 : i32
    %c0_i32_0 = arith.constant 0 : i32
    return %arg0, %c0_i32, %arg1 : i32, i32, i32
  }
}

</mosaic_0001>

<llo_original>
// kernel: critic_forward.2
$region0: #{critic_forward.2}
  #allocation0 [shape = 'u32[]', space=smem, size = 0x4, offset = 0x4, fixed_abs, tag = 'smem constant byte address 0x4 - core index']
  #allocation1 [shape = 'u32[144,128]{1,0:T(1,128)}', space=vmem, size = 0x12000, scoped, tag = 'internal scratch']
  #allocation2 [shape = 'f32[64,8]{1,0:T(8,128)}', space=vmem, size = 0x8000, scoped, tag = 'scratch operand']
  %s0 = inlined_call_operand.vmem [shape: bf16[2,64,128], index: 0, kind: input, shape index: {}]
  %s1 = inlined_call_operand.vmem [shape: bf16[128,8], index: 1, kind: input, shape index: {}]
  %s2 = inlined_call_operand.vmem [shape: f32[1,8], index: 2, kind: input, shape index: {}]
  %s3 = inlined_call_operand.vmem [shape: f32[1,8], index: 3, kind: input, shape index: {}]
  %s4 = inlined_call_operand.vmem [shape: bf16[2,64,8], index: 4, kind: output, shape index: {}]
  %s5 = sld [smem:[#allocation0]]
  $region57: #{critic_forward.2} parent=0
    _
  %s7 = ssub.s32 1, %s5
  %s8 = scalar_select 0, %s7, %s5
  loop: start=0, step=1, limit=4
  $region2: #{critic_forward.2} parent=0 // loop_pre_header
    _
  $region3: #{critic_forward.2} parent=0 // loop_header
    %s10 = sphi 0, %s14
    %p11 = scmp.ge.s32.totalorder %s10, 4
    %s17 = sphi 0, %s36
    %s18 = sphi 0, %s32
    %s19 = sphi 0, %s28
    %s20 = sphi 0, %s17
    %s21 = sphi 0, %s18
    %s22 = sphi 0, %s19
    %s23 = sphi 0, %s20
    %s24 = sphi 0, %s21
    %s25 = sphi 0, %s22
    %s41 = sphi 0, %s43
    %s44 = sphi 0, %s41
    %s45 = sphi 0, %s44
    %s61 = sphi 0, %s45
    %s69 = sphi 0, %s71
    %s72 = sphi 0, %s69
    %s73 = sphi 0, %s72
    %s89 = sphi 0, %s73
    %s95 = sphi 0, %s97
    %s98 = sphi 0, %s95
    %s99 = sphi 0, %s98
    %s115 = sphi 0, %s99
    %s121 = sphi 0, %s123
    %s124 = sphi 0, %s121
    %s125 = sphi 0, %s124
    %s141 = sphi 0, %s125
    %s149 = sphi 0, %s151
    %s152 = sphi 0, %s149
    %s153 = sphi 0, %s152
    %s169 = sphi 0, %s153
  $region4: #{critic_forward.2} parent=0 // loop_header_branch
    %13 = sbr.rel (%p11) target = $region8
  $region5: #{critic_forward.2} parent=0 // loop_body
    %s15 = ssub.s32 %s10, 1
    %s16 = ssub.s32 %s10, 2
    %s26 = sadd.s32 1, %s19
    %p27 = scmp.ge.s32.totalorder %s26, 1
    %s28 = scalar_select %p27, 0, %s26
    %s29 = sadd.s32 1, %s18
    %s30 = scalar_select %p27, %s29, %s18
    %p31 = scmp.ge.s32.totalorder %s30, 1
    %s32 = scalar_select %p31, 0, %s30
    %s33 = sadd.s32 1, %s17
    %s34 = scalar_select %p31, %s33, %s17
    %p35 = scmp.ge.s32.totalorder %s34, 2
    %s36 = scalar_select %p35, 0, %s34
    %s37 = ssub.s32 %s17, %s36
    %s38 = ssub.s32 %s19, %s28
    %s39 = sor.u32 %s37, %s38
    %p40 = scmp.eq.s32.totalorder %s39, 0
    %s42 = sadd.s32 %s41, 1
    %s43 = scalar_select %p40, %s41, %s42
    %p46 = pneg %p40
    %p47 = scmp.eq.s32.totalorder %s10, 1
    %p48 = por %p46, %p47
    %p49 = scmp.ne.s32.totalorder %s41, %s44
    %p50 = scmp.eq.s32.totalorder %s10, 0
    %p51 = por %p49, %p50
    %p52 = scmp.ne.s32.totalorder %s41, %s44
    %p53 = scmp.eq.s32.totalorder %s15, 1
    %p54 = por %p52, %p53
    %p55 = scmp.ne.s32.totalorder %s44, %s45
    %p56 = scmp.eq.s32.totalorder %s15, 0
    %p57 = por %p55, %p56
    %p58 = scmp.ne.s32.totalorder %s44, %s45
    %p59 = scmp.eq.s32.totalorder %s16, 1
    %p60 = por %p58, %p59
    %p62 = scmp.ne.s32.totalorder %s45, %s61
    %p63 = scmp.eq.s32.totalorder %s16, 0
    %p64 = por %p62, %p63
    %s65 = ssub.s32 %s19, %s28
    %s66 = ssub.s32 %s18, %s32
    %s67 = sor.u32 %s65, %s66
    %p68 = scmp.eq.s32.totalorder %s67, 0
    %s70 = sadd.s32 %s69, 1
    %s71 = scalar_select %p68, %s69, %s70
    %p74 = pneg %p68
    %p75 = scmp.eq.s32.totalorder %s10, 1
    %p76 = por %p74, %p75
    %p77 = scmp.ne.s32.totalorder %s69, %s72
    %p78 = scmp.eq.s32.totalorder %s10, 0
    %p79 = por %p77, %p78
    %p80 = scmp.ne.s32.totalorder %s69, %s72
    %p81 = scmp.eq.s32.totalorder %s15, 1
    %p82 = por %p80, %p81
    %p83 = scmp.ne.s32.totalorder %s72, %s73
    %p84 = scmp.eq.s32.totalorder %s15, 0
    %p85 = por %p83, %p84
    %p86 = scmp.ne.s32.totalorder %s72, %s73
    %p87 = scmp.eq.s32.totalorder %s16, 1
    %p88 = por %p86, %p87
    %p90 = scmp.ne.s32.totalorder %s73, %s89
    %p91 = scmp.eq.s32.totalorder %s16, 0
    %p92 = por %p90, %p91
    %s93 = ssub.s32 %s18, %s32
    %p94 = scmp.eq.s32.totalorder %s93, 0
    %s96 = sadd.s32 %s95, 1
    %s97 = scalar_select %p94, %s95, %s96
    %p100 = pneg %p94
    %p101 = scmp.eq.s32.totalorder %s10, 1
    %p102 = por %p100, %p101
    %p103 = scmp.ne.s32.totalorder %s95, %s98
    %p104 = scmp.eq.s32.totalorder %s10, 0
    %p105 = por %p103, %p104
    %p106 = scmp.ne.s32.totalorder %s95, %s98
    %p107 = scmp.eq.s32.totalorder %s15, 1
    %p108 = por %p106, %p107
    %p109 = scmp.ne.s32.totalorder %s98, %s99
    %p110 = scmp.eq.s32.totalorder %s15, 0
    %p111 = por %p109, %p110
    %p112 = scmp.ne.s32.totalorder %s98, %s99
    %p113 = scmp.eq.s32.totalorder %s16, 1
    %p114 = por %p112, %p113
    %p116 = scmp.ne.s32.totalorder %s99, %s115
    %p117 = scmp.eq.s32.totalorder %s16, 0
    %p118 = por %p116, %p117
    %s119 = ssub.s32 %s18, %s32
    %p120 = scmp.eq.s32.totalorder %s119, 0
    %s122 = sadd.s32 %s121, 1
    %s123 = scalar_select %p120, %s121, %s122
    %p126 = pneg %p120
    %p127 = scmp.eq.s32.totalorder %s10, 1
    %p128 = por %p126, %p127
    %p129 = scmp.ne.s32.totalorder %s121, %s124
    %p130 = scmp.eq.s32.totalorder %s10, 0
    %p131 = por %p129, %p130
    %p132 = scmp.ne.s32.totalorder %s121, %s124
    %p133 = scmp.eq.s32.totalorder %s15, 1
    %p134 = por %p132, %p133
    %p135 = scmp.ne.s32.totalorder %s124, %s125
    %p136 = scmp.eq.s32.totalorder %s15, 0
    %p137 = por %p135, %p136
    %p138 = scmp.ne.s32.totalorder %s124, %s125
    %p139 = scmp.eq.s32.totalorder %s16, 1
    %p140 = por %p138, %p139
    %p142 = scmp.ne.s32.totalorder %s125, %s141
    %p143 = scmp.eq.s32.totalorder %s16, 0
    %p144 = por %p142, %p143
    %s145 = ssub.s32 %s17, %s36
    %s146 = ssub.s32 %s18, %s32
    %s147 = sor.u32 %s145, %s146
    %p148 = scmp.eq.s32.totalorder %s147, 0
    %s150 = sadd.s32 %s149, 1
    %s151 = scalar_select %p148, %s149, %s150
    %p154 = pneg %p148
    %p155 = scmp.eq.s32.totalorder %s10, 1
    %p156 = por %p154, %p155
    %p157 = scmp.ne.s32.totalorder %s149, %s152
    %p158 = scmp.eq.s32.totalorder %s10, 0
    %p159 = por %p157, %p158
    %p160 = scmp.ne.s32.totalorder %s149, %s152
    %p161 = scmp.eq.s32.totalorder %s15, 1
    %p162 = por %p160, %p161
    %p163 = scmp.ne.s32.totalorder %s152, %s153
    %p164 = scmp.eq.s32.totalorder %s15, 0
    %p165 = por %p163, %p164
    %p166 = scmp.ne.s32.totalorder %s152, %s153
    %p167 = scmp.eq.s32.totalorder %s16, 1
    %p168 = por %p166, %p167
    %p170 = scmp.ne.s32.totalorder %s153, %s169
    %p171 = scmp.eq.s32.totalorder %s16, 0
    %p172 = por %p170, %p171
    %p173 = scmp.le.s32.totalorder 1, %s10
    %p174 = scmp.lt.s32.totalorder %s10, 3
    %p175 = pnand %p173, %p174
    %p176 = pneg %p175
    // Predicated region
    $region9: #{critic_forward.2} parent=5 // pred_check
      _
    $region10: #{critic_forward.2} parent=5 // pred_check_branch
      %178 = sbr.rel (%p175) target = $region12
    $region11: #{critic_forward.2} parent=5 // pred_region
      %s179 = ssub.s32 %s10, 1
      // Predicated region
      $region13: #{critic_forward.2} parent=11 // pred_check
        %p180 = pneg %p85
      $region14: #{critic_forward.2} parent=11 // pred_check_branch
        %182 = sbr.rel (%p180) target = $region16
      $region15: #{critic_forward.2} parent=11 // pred_region
        %s183 = smul.u32 16, %s22
        %p184 = scmp.lt.s32.totalorder %s183, 15
        %s185 = scalar_select %p184, %s183, 15
        %p186 = scmp.lt.s32.totalorder %s21, 0
        %s187 = scalar_select %p186, %s21, 0
        %s188 = sadd.s32 %s187, %s185
        %s189 = smul.addr %s188, 4
        %s190 = scalar_lea.vmem %s1, %s189
        %s191 = smul.u32 16, %s22
      $region16: #{critic_forward.2} parent=11 // pred_fallthru
        _
      // Predicated region
      $region17: #{critic_forward.2} parent=11 // pred_check
        %p192 = pneg %p111
      $region18: #{critic_forward.2} parent=11 // pred_check_branch
        %194 = sbr.rel (%p192) target = $region20
      $region19: #{critic_forward.2} parent=11 // pred_region
        %p195 = scmp.lt.s32.totalorder %s21, 0
        %s196 = scalar_select %p195, %s21, 0
        %s197 = scalar_lea.vmem %s2, %s196
      $region20: #{critic_forward.2} parent=11 // pred_fallthru
        _
      // Predicated region
      $region21: #{critic_forward.2} parent=11 // pred_check
        %p198 = pneg %p137
      $region22: #{critic_forward.2} parent=11 // pred_check_branch
        %200 = sbr.rel (%p198) target = $region24
      $region23: #{critic_forward.2} parent=11 // pred_region
        %p201 = scmp.lt.s32.totalorder %s21, 0
        %s202 = scalar_select %p201, %s21, 0
        %s203 = scalar_lea.vmem %s3, %s202
      $region24: #{critic_forward.2} parent=11 // pred_fallthru
        _
    $region12: #{critic_forward.2} parent=5 // pred_fallthru
      _
    %p204 = scmp.lt.s32.totalorder %s10, 2
    // Predicated region
    $region25: #{critic_forward.2} parent=5 // pred_check
      %p205 = pneg %p204
    $region26: #{critic_forward.2} parent=5 // pred_check_branch
      %207 = sbr.rel (%p205) target = $region28
    $region27: #{critic_forward.2} parent=5 // pred_region
      // Predicated region
      $region29: #{critic_forward.2} parent=27 // pred_check
        %p208 = pneg %p51
      $region30: #{critic_forward.2} parent=27 // pred_check_branch
        %210 = sbr.rel (%p208) target = $region32
      $region31: #{critic_forward.2} parent=27 // pred_region
        %p211 = scmp.lt.s32.totalorder %s17, 1
        %s212 = scalar_select %p211, %s17, 1
        %p213 = scmp.lt.s32.totalorder %s19, 0
        %s214 = scalar_select %p213, %s19, 0
        %s215 = smul.addr %s212, 8
        %s216 = sadd.s32 %s214, %s215
        %s217 = smul.addr %s216, 4
        %s218 = scalar_lea.vmem %s0, %s217
      $region32: #{critic_forward.2} parent=27 // pred_fallthru
        _
    $region28: #{critic_forward.2} parent=5 // pred_fallthru
      _
    %p219 = scmp.le.s32.totalorder 1, %s10
    %p220 = scmp.lt.s32.totalorder %s10, 3
    %p221 = pnand %p219, %p220
    %p222 = pneg %p221
    // Predicated region
    $region33: #{critic_forward.2} parent=5 // pred_check
      _
    $region34: #{critic_forward.2} parent=5 // pred_check_branch
      %224 = sbr.rel (%p221) target = $region36
    $region35: #{critic_forward.2} parent=5 // pred_region
      %s225 = ssub.s32 %s10, 1
      %p226 = scmp.lt.s32.totalorder %s20, 1
      %s227 = scalar_select %p226, %s20, 1
      %p228 = scmp.lt.s32.totalorder %s22, 0
      %s229 = scalar_select %p228, %s22, 0
      %s230 = smul.addr %s227, 8
      %s231 = sadd.s32 %s229, %s230
      %s232 = smul.addr %s231, 4
      %s233 = scalar_lea.vmem %s0, %s232
      %p234 = pneg %p57
      %p235 = pneg %p54
      %s236 = smul.u32 16, %s22
      %p237 = scmp.lt.s32.totalorder %s236, 15
      %s238 = scalar_select %p237, %s236, 15
      %p239 = scmp.lt.s32.totalorder %s21, 0
      %s240 = scalar_select %p239, %s21, 0
      %s241 = sadd.s32 %s240, %s238
      %s242 = smul.addr %s241, 4
      %s243 = scalar_lea.vmem %s1, %s242
      %p244 = pneg %p85
      %p245 = pneg %p82
      %p246 = scmp.lt.s32.totalorder %s21, 0
      %s247 = scalar_select %p246, %s21, 0
      %s248 = scalar_lea.vmem %s2, %s247
      %p249 = pneg %p111
      %p250 = pneg %p108
      %p251 = scmp.lt.s32.totalorder %s21, 0
      %s252 = scalar_select %p251, %s21, 0
      %s253 = scalar_lea.vmem %s3, %s252
      %p254 = pneg %p137
      %p255 = pneg %p134
      %p256 = pneg %p165
      %p257 = pneg %p162
      %p258 = scmp.lt.s32.totalorder %s20, 1
      %s259 = scalar_select %p258, %s20, 1
      %p260 = scmp.lt.s32.totalorder %s21, 0
      %s261 = scalar_select %p260, %s21, 0
      %s262 = smul.addr %s259, 8
      %s263 = sadd.s32 %s261, %s262
      %s264 = smul.addr %s263, 4
      %s265 = scalar_lea.vmem %s4, %s264
      %p266 = scmp.lt.s32.totalorder %s20, 1
      %s267 = scalar_select %p266, %s20, 1
      %p268 = scmp.lt.s32.totalorder %s22, 0
      %s269 = scalar_select %p268, %s22, 0
      %s270 = smul.addr %s267, 8
      %s271 = sadd.s32 %s269, %s270
      %s272 = smul.addr %s271, 4
      %s273 = scalar_lea.vmem %s0, %s272
      %s274 = smul.u32 16, %s22
      %p275 = scmp.lt.s32.totalorder %s274, 15
      %s276 = scalar_select %p275, %s274, 15
      %p277 = scmp.lt.s32.totalorder %s21, 0
      %s278 = scalar_select %p277, %s21, 0
      %s279 = sadd.s32 %s278, %s276
      %s280 = smul.addr %s279, 4
      %s281 = scalar_lea.vmem %s1, %s280
      %s282 = smul.u32 16, %s22
      %p283 = scmp.lt.s32.totalorder %s21, 0
      %s284 = scalar_select %p283, %s21, 0
      %s285 = scalar_lea.vmem %s2, %s284
      %p286 = scmp.lt.s32.totalorder %s21, 0
      %s287 = scalar_select %p286, %s21, 0
      %s288 = scalar_lea.vmem %s3, %s287
      %p289 = scmp.lt.s32.totalorder %s20, 1
      %s290 = scalar_select %p289, %s20, 1
      %p291 = scmp.lt.s32.totalorder %s21, 0
      %s292 = scalar_select %p291, %s21, 0
      %s293 = smul.addr %s290, 8
      %s294 = sadd.s32 %s292, %s293
      %s295 = smul.addr %s294, 4
      %s296 = scalar_lea.vmem %s4, %s295
      %p298 = scmp.eq.s32.totalorder %s22, 0
      // Predicated region
      $region37: #{critic_forward.2} parent=35 // pred_check
        %p299 = pneg %p298
      $region38: #{critic_forward.2} parent=35 // pred_check_branch
        %301 = sbr.rel (%p299) target = $region40
      $region39: #{critic_forward.2} parent=35 // pred_region
        %vm302 = vcmask 64512
        %303 = vst.msk [vmem:[#allocation2] sm:$0xff] %vm302, 0.0
        %304 = vst.msk [vmem:[#allocation2 + $0x8] sm:$0xff] %vm302, 0.0
        %305 = vst.msk [vmem:[#allocation2 + $0x10] sm:$0xff] %vm302, 0.0
        %306 = vst.msk [vmem:[#allocation2 + $0x18] sm:$0xff] %vm302, 0.0
        %307 = vst.msk [vmem:[#allocation2 + $0x20] sm:$0xff] %vm302, 0.0
        %308 = vst.msk [vmem:[#allocation2 + $0x28] sm:$0xff] %vm302, 0.0
        %309 = vst.msk [vmem:[#allocation2 + $0x30] sm:$0xff] %vm302, 0.0
        %310 = vst.msk [vmem:[#allocation2 + $0x38] sm:$0xff] %vm302, 0.0
      $region40: #{critic_forward.2} parent=35 // pred_fallthru
        _
      %v311 = vld [vmem:[#allocation2] sm:$0xff]
      %v312 = vld [vmem:[#allocation2 + $0x8] sm:$0xff]
      %v313 = vld [vmem:[#allocation2 + $0x10] sm:$0xff]
      %v314 = vld [vmem:[#allocation2 + $0x18] sm:$0xff]
      %v315 = vld [vmem:[#allocation2 + $0x20] sm:$0xff]
      %v316 = vld [vmem:[#allocation2 + $0x28] sm:$0xff]
      %v317 = vld [vmem:[#allocation2 + $0x30] sm:$0xff]
      %v318 = vld [vmem:[#allocation2 + $0x38] sm:$0xff]
      %v319 = vld [vmem:[%s273] sm:$0xf]
      %v320 = vld [vmem:[%s273 + $0x4] sm:$0xf]
      %v321 = vld [vmem:[%s273 + $0x8] sm:$0xf]
      %v322 = vld [vmem:[%s273 + $0xc] sm:$0xf]
      %v323 = vld [vmem:[%s273 + $0x10] sm:$0xf]
      %v324 = vld [vmem:[%s273 + $0x14] sm:$0xf]
      %v325 = vld [vmem:[%s273 + $0x18] sm:$0xf]
      %v326 = vld [vmem:[%s273 + $0x1c] sm:$0xf]
      %v327 = vld [vmem:[%s281] sm:$0xf]
      %v328 = vld [vmem:[%s281 + $0x4] sm:$0xf]
      %v329 = vld [vmem:[%s281 + $0x8] sm:$0xf]
      %v330 = vld [vmem:[%s281 + $0xc] sm:$0xf]
      %v331 = vld [vmem:[%s281 + $0x10] sm:$0xf]
      %v332 = vld [vmem:[%s281 + $0x14] sm:$0xf]
      %v333 = vld [vmem:[%s281 + $0x18] sm:$0xf]
      %v334 = vld [vmem:[%s281 + $0x1c] sm:$0xf]
      %v335 = vld [vmem:[%s281 + $0x20] sm:$0xf]
      %v336 = vld [vmem:[%s281 + $0x24] sm:$0xf]
      %v337 = vld [vmem:[%s281 + $0x28] sm:$0xf]
      %v338 = vld [vmem:[%s281 + $0x2c] sm:$0xf]
      %v339 = vld [vmem:[%s281 + $0x30] sm:$0xf]
      %v340 = vld [vmem:[%s281 + $0x34] sm:$0xf]
      %v341 = vld [vmem:[%s281 + $0x38] sm:$0xf]
      %v342 = vld [vmem:[%s281 + $0x3c] sm:$0xf]
      %v351 = vunpack.c.l.b16 %v319
      %v352 = vunpack.c.l.b16 %v320
      %v353 = vunpack.c.l.b16 %v321
      %v354 = vunpack.c.l.b16 %v322
      %v355 = vunpack.c.l.b16 %v323
      %v356 = vunpack.c.l.b16 %v324
      %v357 = vunpack.c.l.b16 %v325
      %v358 = vunpack.c.l.b16 %v326
      %v359 = vpack.c.b16 %v352, %v351
      %v360 = vpack.c.b16 %v354, %v353
      %v361 = vpack.c.b16 %v356, %v355
      %v362 = vpack.c.b16 %v358, %v357
      %v383 = vunpack.c.l.b16 %v327
      %v384 = vunpack.c.l.b16 %v328
      %v385 = vunpack.c.l.b16 %v329
      %v386 = vunpack.c.l.b16 %v330
      %v387 = vunpack.c.l.b16 %v331
      %v388 = vunpack.c.l.b16 %v332
      %v389 = vunpack.c.l.b16 %v333
      %v390 = vunpack.c.l.b16 %v334
      %v391 = vunpack.c.l.b16 %v335
      %v392 = vunpack.c.l.b16 %v336
      %v393 = vunpack.c.l.b16 %v337
      %v394 = vunpack.c.l.b16 %v338
      %v395 = vunpack.c.l.b16 %v339
      %v396 = vunpack.c.l.b16 %v340
      %v397 = vunpack.c.l.b16 %v341
      %v398 = vunpack.c.l.b16 %v342
      %v399 = vpack.c.b16 %v384, %v383
      %v400 = vpack.c.b16 %v386, %v385
      %v401 = vpack.c.b16 %v388, %v387
      %v402 = vpack.c.b16 %v390, %v389
      %v403 = vpack.c.b16 %v392, %v391
      %v404 = vpack.c.b16 %v394, %v393
      %v405 = vpack.c.b16 %v396, %v395
      %v406 = vpack.c.b16 %v398, %v397
      %415 = vmatprep.subr.bf16.mxu0 0
      %416 = vmatpush1.bf16.msra.mxu0 %v399
      %417 = vmatprep.subr.bf16.mxu0 0
      %418 = vmatpush1.bf16.msra.mxu0 %v400
      %419 = vmatprep.subr.bf16.mxu0 0
      %420 = vmatpush1.bf16.msra.mxu0 %v401
      %421 = vmatprep.subr.bf16.mxu0 0
      %422 = vmatpush1.bf16.msra.mxu0 %v402
      %423 = vmatprep.subr.bf16.mxu0 0
      %424 = vmatpush1.bf16.msra.mxu0 %v403
      %425 = vmatprep.subr.bf16.mxu0 0
      %426 = vmatpush1.bf16.msra.mxu0 %v404
      %427 = vmatprep.subr.bf16.mxu0 0
      %428 = vmatpush1.bf16.msra.mxu0 %v405
      %429 = vmatprep.subr.bf16.mxu0 0
      %430 = vmatpush1.bf16.msra.mxu0 %v406
      %431 = vmatprep.subr.bf16.mxu0 0
      %432 = vmatpush1.bf16.msra.mxu0 0
      %433 = vmatprep.subr.bf16.mxu0 0
      %434 = vmatpush1.bf16.msra.mxu0 0
      %435 = vmatprep.subr.bf16.mxu0 0
      %436 = vmatpush1.bf16.msra.mxu0 0
      %437 = vmatprep.subr.bf16.mxu0 0
      %438 = vmatpush1.bf16.msra.mxu0 0
      %439 = vmatprep.subr.bf16.mxu0 0
      %440 = vmatpush1.bf16.msra.mxu0 0
      %441 = vmatprep.subr.bf16.mxu0 0
      %442 = vmatpush1.bf16.msra.mxu0 0
      %443 = vmatprep.subr.bf16.mxu0 0
      %444 = vmatpush1.bf16.msra.mxu0 0
      %445 = vmatprep.subr.bf16.mxu0 0
      %446 = vmatpush1.bf16.msra.mxu0 0
      %447 = vmatprep.mubr.bf16.mxu0 0
      %448 = vmatmul.mubr.bf16.gmra.mrb[0].mxu0 %v359
      %v449 = vpop.f32.mrb[0].mxu0
      %v450 = vadd.f32 0.0, %v449
      %v451 = vpop.f32.mrb[0].mxu0
      %v452 = vpop.f32.mrb[0].mxu0
      %v453 = vadd.f32 0.0, %v452
      %v454 = vpop.f32.mrb[0].mxu0
      %455 = vmatprep.mubr.bf16.mxu0 0
      %456 = vmatmul.mubr.bf16.gmra.mrb[0].mxu0 %v360
      %v457 = vpop.f32.mrb[0].mxu0
      %v458 = vadd.f32 0.0, %v457
      %v459 = vpop.f32.mrb[0].mxu0
      %v460 = vpop.f32.mrb[0].mxu0
      %v461 = vadd.f32 0.0, %v460
      %v462 = vpop.f32.mrb[0].mxu0
      %463 = vmatprep.mubr.bf16.mxu0 0
      %464 = vmatmul.mubr.bf16.gmra.mrb[0].mxu0 %v361
      %v465 = vpop.f32.mrb[0].mxu0
      %v466 = vadd.f32 0.0, %v465
      %v467 = vpop.f32.mrb[0].mxu0
      %v468 = vpop.f32.mrb[0].mxu0
      %v469 = vadd.f32 0.0, %v468
      %v470 = vpop.f32.mrb[0].mxu0
      %471 = vmatprep.mubr.bf16.mxu0 0
      %472 = vmatmul.mubr.bf16.gmra.mrb[0].mxu0 %v362
      %v473 = vpop.f32.mrb[0].mxu0
      %v474 = vadd.f32 0.0, %v473
      %v475 = vpop.f32.mrb[0].mxu0
      %v476 = vpop.f32.mrb[0].mxu0
      %v477 = vadd.f32 0.0, %v476
      %v478 = vpop.f32.mrb[0].mxu0
      %479 = vdwg.mxu0
      %v480 = vadd.f32 %v311, %v450
      %v481 = vadd.f32 %v312, %v453
      %v482 = vadd.f32 %v313, %v458
      %v483 = vadd.f32 %v314, %v461
      %v484 = vadd.f32 %v315, %v466
      %v485 = vadd.f32 %v316, %v469
      %v486 = vadd.f32 %v317, %v474
      %v487 = vadd.f32 %v318, %v477
      %vm488 = vcmask 64512
      %489 = vst.msk [vmem:[#allocation2] sm:$0xff] %vm488, %v480
      %490 = vst.msk [vmem:[#allocation2 + $0x8] sm:$0xff] %vm488, %v481
      %491 = vst.msk [vmem:[#allocation2 + $0x10] sm:$0xff] %vm488, %v482
      %492 = vst.msk [vmem:[#allocation2 + $0x18] sm:$0xff] %vm488, %v483
      %493 = vst.msk [vmem:[#allocation2 + $0x20] sm:$0xff] %vm488, %v484
      %494 = vst.msk [vmem:[#allocation2 + $0x28] sm:$0xff] %vm488, %v485
      %495 = vst.msk [vmem:[#allocation2 + $0x30] sm:$0xff] %vm488, %v486
      %496 = vst.msk [vmem:[#allocation2 + $0x38] sm:$0xff] %vm488, %v487
      // Predicated region
      $region41: #{critic_forward.2} parent=35 // pred_check
        %p497 = pneg %p298
      $region42: #{critic_forward.2} parent=35 // pred_check_branch
        %499 = sbr.rel (%p497) target = $region44
      $region43: #{critic_forward.2} parent=35 // pred_region
        %v500 = vld [vmem:[%s285] sm:$0x1]
        %v501 = vld [vmem:[%s288] sm:$0x1]
        %v502 = vld [vmem:[#allocation2] sm:$0xff]
        %v503 = vld [vmem:[#allocation2 + $0x8] sm:$0xff]
        %v504 = vld [vmem:[#allocation2 + $0x10] sm:$0xff]
        %v505 = vld [vmem:[#allocation2 + $0x18] sm:$0xff]
        %v506 = vld [vmem:[#allocation2 + $0x20] sm:$0xff]
        %v507 = vld [vmem:[#allocation2 + $0x28] sm:$0xff]
        %v508 = vld [vmem:[#allocation2 + $0x30] sm:$0xff]
        %v509 = vld [vmem:[#allocation2 + $0x38] sm:$0xff]
        %v510 = vsel %vm488, %v502, 0.0
        %v511 = vsel %vm488, %v503, 0.0
        %v512 = vadd.f32 %v510, %v511
        %v513 = vsel %vm488, %v504, 0.0
        %v514 = vadd.f32 %v512, %v513
        %v515 = vsel %vm488, %v505, 0.0
        %v516 = vadd.f32 %v514, %v515
        %v517 = vsel %vm488, %v506, 0.0
        %v518 = vadd.f32 %v516, %v517
        %v519 = vsel %vm488, %v507, 0.0
        %v520 = vadd.f32 %v518, %v519
        %v521 = vsel %vm488, %v508, 0.0
        %v522 = vadd.f32 %v520, %v521
        %v523 = vsel %vm488, %v509, 0.0
        %v524 = vadd.f32 %v522, %v523
        %v525 = vrot.slane %v524, 4
        %v526 = vadd.f32 %v524, %v525
        %v527 = vrot.slane %v526, 2
        %v528 = vadd.f32 %v526, %v527
        %v529 = vrot.slane %v528, 1
        %v530 = vadd.f32 %v528, %v529
        %v531 = vadd.f32 %v530, 0.0
        %v532 = vmul.f32 %v502, %v502
        %v533 = vmul.f32 %v503, %v503
        %v534 = vmul.f32 %v504, %v504
        %v535 = vmul.f32 %v505, %v505
        %v536 = vmul.f32 %v506, %v506
        %v537 = vmul.f32 %v507, %v507
        %v538 = vmul.f32 %v508, %v508
        %v539 = vmul.f32 %v509, %v509
        %v540 = vsel %vm488, %v532, 0.0
        %v541 = vsel %vm488, %v533, 0.0
        %v542 = vadd.f32 %v540, %v541
        %v543 = vsel %vm488, %v534, 0.0
        %v544 = vadd.f32 %v542, %v543
        %v545 = vsel %vm488, %v535, 0.0
        %v546 = vadd.f32 %v544, %v545
        %v547 = vsel %vm488, %v536, 0.0
        %v548 = vadd.f32 %v546, %v547
        %v549 = vsel %vm488, %v537, 0.0
        %v550 = vadd.f32 %v548, %v549
        %v551 = vsel %vm488, %v538, 0.0
        %v552 = vadd.f32 %v550, %v551
        %v553 = vsel %vm488, %v539, 0.0
        %v554 = vadd.f32 %v552, %v553
        %v555 = vrot.slane %v554, 4
        %v556 = vadd.f32 %v554, %v555
        %v557 = vrot.slane %v556, 2
        %v558 = vadd.f32 %v556, %v557
        %v559 = vrot.slane %v558, 1
        %v560 = vadd.f32 %v558, %v559
        %v561 = vadd.f32 %v560, 0.0
        %v562 = vmul.f32 %v531, 0.015625
        %v563 = vmul.f32 %v561, 0.015625
        %v564 = vmul.f32 %v562, %v562
        %v565 = vsub.f32 %v563, %v564
        %v566 = vmax.f32 %v565, 0.0
        %v567 = vadd.f32 %v566, 1e-05
        %v568 = vrsqrt.pop %v567
        %v569 = vmul.f32 %v568, %v500
        %v570 = vmul.f32 %v562, %v569
        %v571 = vsub.f32 %v501, %v570
        %v572 = vlaneseq
        %v573 = vshrl.u32 %v572, 7
        %v574 = vsub.s32 0, %v573
        %v575 = vrot.slane %v569, %v574
        %v576 = vmul.f32 %v502, %v575
        %v577 = vmul.f32 %v503, %v575
        %v578 = vmul.f32 %v504, %v575
        %v579 = vmul.f32 %v505, %v575
        %v580 = vmul.f32 %v506, %v575
        %v581 = vmul.f32 %v507, %v575
        %v582 = vmul.f32 %v508, %v575
        %v583 = vmul.f32 %v509, %v575
        %v585 = vlaneseq
        %v586 = vshrl.u32 %v585, 7
        %v587 = vsub.s32 0, %v586
        %v588 = vrot.slane %v571, %v587
        %v590 = vadd.f32 %v576, %v588
        %v591 = vadd.f32 %v577, %v588
        %v592 = vadd.f32 %v578, %v588
        %v593 = vadd.f32 %v579, %v588
        %v594 = vadd.f32 %v580, %v588
        %v595 = vadd.f32 %v581, %v588
        %v596 = vadd.f32 %v582, %v588
        %v597 = vadd.f32 %v583, %v588
        %vm598 = vcmp.gt.f32.partialorder %v590, 0.0
        %vm599 = vcmp.gt.f32.partialorder %v591, 0.0
        %vm600 = vcmp.gt.f32.partialorder %v592, 0.0
        %vm601 = vcmp.gt.f32.partialorder %v593, 0.0
        %vm602 = vcmp.gt.f32.partialorder %v594, 0.0
        %vm603 = vcmp.gt.f32.partialorder %v595, 0.0
        %vm604 = vcmp.gt.f32.partialorder %v596, 0.0
        %vm605 = vcmp.gt.f32.partialorder %v597, 0.0
        %v606 = vmul.f32 %v590, 0.2
        %v607 = vmul.f32 %v591, 0.2
        %v608 = vmul.f32 %v592, 0.2
        %v609 = vmul.f32 %v593, 0.2
        %v610 = vmul.f32 %v594, 0.2
        %v611 = vmul.f32 %v595, 0.2
        %v612 = vmul.f32 %v596, 0.2
        %v613 = vmul.f32 %v597, 0.2
        %v614 = vsel %vm598, %v590, %v606
        %v615 = vsel %vm599, %v591, %v607
        %v616 = vsel %vm600, %v592, %v608
        %v617 = vsel %vm601, %v593, %v609
        %v618 = vsel %vm602, %v594, %v610
        %v619 = vsel %vm603, %v595, %v611
        %v620 = vsel %vm604, %v596, %v612
        %v621 = vsel %vm605, %v597, %v613
        %v622 = vpack.c.bf16 %v615, %v614
        %v623 = vpack.c.bf16 %v617, %v616
        %v624 = vpack.c.bf16 %v619, %v618
        %v625 = vpack.c.bf16 %v621, %v620
        %v630 = vunpack.c.l.b16 %v622
        %v631 = vunpack.c.h.b16 %v622
        %v632 = vunpack.c.l.b16 %v623
        %v633 = vunpack.c.h.b16 %v623
        %v634 = vunpack.c.l.b16 %v624
        %v635 = vunpack.c.h.b16 %v624
        %v636 = vunpack.c.l.b16 %v625
        %v637 = vunpack.c.h.b16 %v625
        %v638 = vpack.c.b16 %v630, %v630
        %v639 = vpack.c.b16 %v631, %v631
        %v640 = vpack.c.b16 %v632, %v632
        %v641 = vpack.c.b16 %v633, %v633
        %v642 = vpack.c.b16 %v634, %v634
        %v643 = vpack.c.b16 %v635, %v635
        %v644 = vpack.c.b16 %v636, %v636
        %v645 = vpack.c.b16 %v637, %v637
        %vm654 = vcmask 60416
        %655 = vst.msk [vmem:[%s296] sm:$0xf] %vm654, %v638
        %656 = vst.msk [vmem:[%s296 + $0x4] sm:$0xf] %vm654, %v639
        %657 = vst.msk [vmem:[%s296 + $0x8] sm:$0xf] %vm654, %v640
        %658 = vst.msk [vmem:[%s296 + $0xc] sm:$0xf] %vm654, %v641
        %659 = vst.msk [vmem:[%s296 + $0x10] sm:$0xf] %vm654, %v642
        %660 = vst.msk [vmem:[%s296 + $0x14] sm:$0xf] %vm654, %v643
        %661 = vst.msk [vmem:[%s296 + $0x18] sm:$0xf] %vm654, %v644
        %662 = vst.msk [vmem:[%s296 + $0x1c] sm:$0xf] %vm654, %v645
      $region44: #{critic_forward.2} parent=35 // pred_fallthru
        _
      %p663 = scmp.lt.s32.totalorder %s20, 1
      %s664 = scalar_select %p663, %s20, 1
      %p665 = scmp.lt.s32.totalorder %s21, 0
      %s666 = scalar_select %p665, %s21, 0
      %s667 = smul.addr %s664, 8
      %s668 = sadd.s32 %s666, %s667
      %s669 = smul.addr %s668, 4
      %s670 = scalar_lea.vmem %s4, %s669
      // Predicated region
      $region45: #{critic_forward.2} parent=35 // pred_check
        %p671 = pneg %p162
      $region46: #{critic_forward.2} parent=35 // pred_check_branch
        %673 = sbr.rel (%p671) target = $region48
      $region47: #{critic_forward.2} parent=35 // pred_region
        _
      $region48: #{critic_forward.2} parent=35 // pred_fallthru
        _
    $region36: #{critic_forward.2} parent=5 // pred_fallthru
      _
    %p674 = scmp.le.s32.totalorder 2, %s10
    // Predicated region
    $region49: #{critic_forward.2} parent=5 // pred_check
      %p675 = pneg %p674
    $region50: #{critic_forward.2} parent=5 // pred_check_branch
      %677 = sbr.rel (%p675) target = $region52
    $region51: #{critic_forward.2} parent=5 // pred_region
      %s678 = ssub.s32 %s10, 2
      // Predicated region
      $region53: #{critic_forward.2} parent=51 // pred_check
        %p679 = pneg %p168
      $region54: #{critic_forward.2} parent=51 // pred_check_branch
        %681 = sbr.rel (%p679) target = $region56
      $region55: #{critic_forward.2} parent=51 // pred_region
        %p682 = scmp.lt.s32.totalorder %s23, 1
        %s683 = scalar_select %p682, %s23, 1
        %p684 = scmp.lt.s32.totalorder %s24, 0
        %s685 = scalar_select %p684, %s24, 0
        %s686 = smul.addr %s683, 8
        %s687 = sadd.s32 %s685, %s686
        %s688 = smul.addr %s687, 4
        %s689 = scalar_lea.vmem %s4, %s688
      $region56: #{critic_forward.2} parent=51 // pred_fallthru
        _
    $region52: #{critic_forward.2} parent=5 // pred_fallthru
      _
  $region6: #{critic_forward.2} parent=0 // loop_footer
    %s14 = sadd.s32 1, %s10
  $region7: #{critic_forward.2} parent=0 // loop_footer_branch
    %9 = sbr.rel target = $region3
  $region8: #{critic_forward.2} parent=0 // loop_exit
    _

// kernel: critic_forward.3
$region0: #{critic_forward.3}
  #allocation0 [shape = 'u32[]', space=smem, size = 0x4, offset = 0x4, fixed_abs, tag = 'smem constant byte address 0x4 - core index']
  #allocation1 [shape = 'u32[144,128]{1,0:T(1,128)}', space=vmem, size = 0x12000, scoped, tag = 'internal scratch']
  #allocation2 [shape = 'f32[16,16]{1,0:T(8,128)}', space=vmem, size = 0x2000, scoped, tag = 'scratch operand']
  %s0 = inlined_call_operand.vmem [shape: bf16[2,16,128], index: 0, kind: input, shape index: {}]
  %s1 = inlined_call_operand.vmem [shape: bf16[128,16], index: 1, kind: input, shape index: {}]
  %s2 = inlined_call_operand.vmem [shape: f32[1,16], index: 2, kind: input, shape index: {}]
  %s3 = inlined_call_operand.vmem [shape: f32[1,16], index: 3, kind: input, shape index: {}]
  %s4 = inlined_call_operand.vmem [shape: bf16[2,16,16], index: 4, kind: output, shape index: {}]
  %s5 = sld [smem:[#allocation0]]
  $region57: #{critic_forward.3} parent=0
    _
  %s7 = ssub.s32 1, %s5
  %s8 = scalar_select 0, %s7, %s5
  loop: start=0, step=1, limit=4
  $region2: #{critic_forward.3} parent=0 // loop_pre_header
    _
  $region3: #{critic_forward.3} parent=0 // loop_header
    %s10 = sphi 0, %s14
    %p11 = scmp.ge.s32.totalorder %s10, 4
    %s17 = sphi 0, %s36
    %s18 = sphi 0, %s32
    %s19 = sphi 0, %s28
    %s20 = sphi 0, %s17
    %s21 = sphi 0, %s18
    %s22 = sphi 0, %s19
    %s23 = sphi 0, %s20
    %s24 = sphi 0, %s21
    %s25 = sphi 0, %s22
    %s41 = sphi 0, %s43
    %s44 = sphi 0, %s41
    %s45 = sphi 0, %s44
    %s61 = sphi 0, %s45
    %s69 = sphi 0, %s71
    %s72 = sphi 0, %s69
    %s73 = sphi 0, %s72
    %s89 = sphi 0, %s73
    %s95 = sphi 0, %s97
    %s98 = sphi 0, %s95
    %s99 = sphi 0, %s98
    %s115 = sphi 0, %s99
    %s121 = sphi 0, %s123
    %s124 = sphi 0, %s121
    %s125 = sphi 0, %s124
    %s141 = sphi 0, %s125
    %s149 = sphi 0, %s151
    %s152 = sphi 0, %s149
    %s153 = sphi 0, %s152
    %s169 = sphi 0, %s153
  $region4: #{critic_forward.3} parent=0 // loop_header_branch
    %13 = sbr.rel (%p11) target = $region8
  $region5: #{critic_forward.3} parent=0 // loop_body
    %s15 = ssub.s32 %s10, 1
    %s16 = ssub.s32 %s10, 2
    %s26 = sadd.s32 1, %s19
    %p27 = scmp.ge.s32.totalorder %s26, 1
    %s28 = scalar_select %p27, 0, %s26
    %s29 = sadd.s32 1, %s18
    %s30 = scalar_select %p27, %s29, %s18
    %p31 = scmp.ge.s32.totalorder %s30, 1
    %s32 = scalar_select %p31, 0, %s30
    %s33 = sadd.s32 1, %s17
    %s34 = scalar_select %p31, %s33, %s17
    %p35 = scmp.ge.s32.totalorder %s34, 2
    %s36 = scalar_select %p35, 0, %s34
    %s37 = ssub.s32 %s17, %s36
    %s38 = ssub.s32 %s19, %s28
    %s39 = sor.u32 %s37, %s38
    %p40 = scmp.eq.s32.totalorder %s39, 0
    %s42 = sadd.s32 %s41, 1
    %s43 = scalar_select %p40, %s41, %s42
    %p46 = pneg %p40
    %p47 = scmp.eq.s32.totalorder %s10, 1
    %p48 = por %p46, %p47
    %p49 = scmp.ne.s32.totalorder %s41, %s44
    %p50 = scmp.eq.s32.totalorder %s10, 0
    %p51 = por %p49, %p50
    %p52 = scmp.ne.s32.totalorder %s41, %s44
    %p53 = scmp.eq.s32.totalorder %s15, 1
    %p54 = por %p52, %p53
    %p55 = scmp.ne.s32.totalorder %s44, %s45
    %p56 = scmp.eq.s32.totalorder %s15, 0
    %p57 = por %p55, %p56
    %p58 = scmp.ne.s32.totalorder %s44, %s45
    %p59 = scmp.eq.s32.totalorder %s16, 1
    %p60 = por %p58, %p59
    %p62 = scmp.ne.s32.totalorder %s45, %s61
    %p63 = scmp.eq.s32.totalorder %s16, 0
    %p64 = por %p62, %p63
    %s65 = ssub.s32 %s19, %s28
    %s66 = ssub.s32 %s18, %s32
    %s67 = sor.u32 %s65, %s66
    %p68 = scmp.eq.s32.totalorder %s67, 0
    %s70 = sadd.s32 %s69, 1
    %s71 = scalar_select %p68, %s69, %s70
    %p74 = pneg %p68
    %p75 = scmp.eq.s32.totalorder %s10, 1
    %p76 = por %p74, %p75
    %p77 = scmp.ne.s32.totalorder %s69, %s72
    %p78 = scmp.eq.s32.totalorder %s10, 0
    %p79 = por %p77, %p78
    %p80 = scmp.ne.s32.totalorder %s69, %s72
    %p81 = scmp.eq.s32.totalorder %s15, 1
    %p82 = por %p80, %p81
    %p83 = scmp.ne.s32.totalorder %s72, %s73
    %p84 = scmp.eq.s32.totalorder %s15, 0
    %p85 = por %p83, %p84
    %p86 = scmp.ne.s32.totalorder %s72, %s73
    %p87 = scmp.eq.s32.totalorder %s16, 1
    %p88 = por %p86, %p87
    %p90 = scmp.ne.s32.totalorder %s73, %s89
    %p91 = scmp.eq.s32.totalorder %s16, 0
    %p92 = por %p90, %p91
    %s93 = ssub.s32 %s18, %s32
    %p94 = scmp.eq.s32.totalorder %s93, 0
    %s96 = sadd.s32 %s95, 1
    %s97 = scalar_select %p94, %s95, %s96
    %p100 = pneg %p94
    %p101 = scmp.eq.s32.totalorder %s10, 1
    %p102 = por %p100, %p101
    %p103 = scmp.ne.s32.totalorder %s95, %s98
    %p104 = scmp.eq.s32.totalorder %s10, 0
    %p105 = por %p103, %p104
    %p106 = scmp.ne.s32.totalorder %s95, %s98
    %p107 = scmp.eq.s32.totalorder %s15, 1
    %p108 = por %p106, %p107
    %p109 = scmp.ne.s32.totalorder %s98, %s99
    %p110 = scmp.eq.s32.totalorder %s15, 0
    %p111 = por %p109, %p110
    %p112 = scmp.ne.s32.totalorder %s98, %s99
    %p113 = scmp.eq.s32.totalorder %s16, 1
    %p114 = por %p112, %p113
    %p116 = scmp.ne.s32.totalorder %s99, %s115
    %p117 = scmp.eq.s32.totalorder %s16, 0
    %p118 = por %p116, %p117
    %s119 = ssub.s32 %s18, %s32
    %p120 = scmp.eq.s32.totalorder %s119, 0
    %s122 = sadd.s32 %s121, 1
    %s123 = scalar_select %p120, %s121, %s122
    %p126 = pneg %p120
    %p127 = scmp.eq.s32.totalorder %s10, 1
    %p128 = por %p126, %p127
    %p129 = scmp.ne.s32.totalorder %s121, %s124
    %p130 = scmp.eq.s32.totalorder %s10, 0
    %p131 = por %p129, %p130
    %p132 = scmp.ne.s32.totalorder %s121, %s124
    %p133 = scmp.eq.s32.totalorder %s15, 1
    %p134 = por %p132, %p133
    %p135 = scmp.ne.s32.totalorder %s124, %s125
    %p136 = scmp.eq.s32.totalorder %s15, 0
    %p137 = por %p135, %p136
    %p138 = scmp.ne.s32.totalorder %s124, %s125
    %p139 = scmp.eq.s32.totalorder %s16, 1
    %p140 = por %p138, %p139
    %p142 = scmp.ne.s32.totalorder %s125, %s141
    %p143 = scmp.eq.s32.totalorder %s16, 0
    %p144 = por %p142, %p143
    %s145 = ssub.s32 %s17, %s36
    %s146 = ssub.s32 %s18, %s32
    %s147 = sor.u32 %s145, %s146
    %p148 = scmp.eq.s32.totalorder %s147, 0
    %s150 = sadd.s32 %s149, 1
    %s151 = scalar_select %p148, %s149, %s150
    %p154 = pneg %p148
    %p155 = scmp.eq.s32.totalorder %s10, 1
    %p156 = por %p154, %p155
    %p157 = scmp.ne.s32.totalorder %s149, %s152
    %p158 = scmp.eq.s32.totalorder %s10, 0
    %p159 = por %p157, %p158
    %p160 = scmp.ne.s32.totalorder %s149, %s152
    %p161 = scmp.eq.s32.totalorder %s15, 1
    %p162 = por %p160, %p161
    %p163 = scmp.ne.s32.totalorder %s152, %s153
    %p164 = scmp.eq.s32.totalorder %s15, 0
    %p165 = por %p163, %p164
    %p166 = scmp.ne.s32.totalorder %s152, %s153
    %p167 = scmp.eq.s32.totalorder %s16, 1
    %p168 = por %p166, %p167
    %p170 = scmp.ne.s32.totalorder %s153, %s169
    %p171 = scmp.eq.s32.totalorder %s16, 0
    %p172 = por %p170, %p171
    %p173 = scmp.le.s32.totalorder 1, %s10
    %p174 = scmp.lt.s32.totalorder %s10, 3
    %p175 = pnand %p173, %p174
    %p176 = pneg %p175
    // Predicated region
    $region9: #{critic_forward.3} parent=5 // pred_check
      _
    $region10: #{critic_forward.3} parent=5 // pred_check_branch
      %178 = sbr.rel (%p175) target = $region12
    $region11: #{critic_forward.3} parent=5 // pred_region
      %s179 = ssub.s32 %s10, 1
      // Predicated region
      $region13: #{critic_forward.3} parent=11 // pred_check
        %p180 = pneg %p85
      $region14: #{critic_forward.3} parent=11 // pred_check_branch
        %182 = sbr.rel (%p180) target = $region16
      $region15: #{critic_forward.3} parent=11 // pred_region
        %s183 = smul.u32 16, %s22
        %p184 = scmp.lt.s32.totalorder %s183, 15
        %s185 = scalar_select %p184, %s183, 15
        %p186 = scmp.lt.s32.totalorder %s21, 0
        %s187 = scalar_select %p186, %s21, 0
        %s188 = sadd.s32 %s187, %s185
        %s189 = smul.addr %s188, 4
        %s190 = scalar_lea.vmem %s1, %s189
        %s191 = smul.u32 16, %s22
      $region16: #{critic_forward.3} parent=11 // pred_fallthru
        _
      // Predicated region
      $region17: #{critic_forward.3} parent=11 // pred_check
        %p192 = pneg %p111
      $region18: #{critic_forward.3} parent=11 // pred_check_branch
        %194 = sbr.rel (%p192) target = $region20
      $region19: #{critic_forward.3} parent=11 // pred_region
        %p195 = scmp.lt.s32.totalorder %s21, 0
        %s196 = scalar_select %p195, %s21, 0
        %s197 = scalar_lea.vmem %s2, %s196
      $region20: #{critic_forward.3} parent=11 // pred_fallthru
        _
      // Predicated region
      $region21: #{critic_forward.3} parent=11 // pred_check
        %p198 = pneg %p137
      $region22: #{critic_forward.3} parent=11 // pred_check_branch
        %200 = sbr.rel (%p198) target = $region24
      $region23: #{critic_forward.3} parent=11 // pred_region
        %p201 = scmp.lt.s32.totalorder %s21, 0
        %s202 = scalar_select %p201, %s21, 0
        %s203 = scalar_lea.vmem %s3, %s202
      $region24: #{critic_forward.3} parent=11 // pred_fallthru
        _
    $region12: #{critic_forward.3} parent=5 // pred_fallthru
      _
    %p204 = scmp.lt.s32.totalorder %s10, 2
    // Predicated region
    $region25: #{critic_forward.3} parent=5 // pred_check
      %p205 = pneg %p204
    $region26: #{critic_forward.3} parent=5 // pred_check_branch
      %207 = sbr.rel (%p205) target = $region28
    $region27: #{critic_forward.3} parent=5 // pred_region
      // Predicated region
      $region29: #{critic_forward.3} parent=27 // pred_check
        %p208 = pneg %p51
      $region30: #{critic_forward.3} parent=27 // pred_check_branch
        %210 = sbr.rel (%p208) target = $region32
      $region31: #{critic_forward.3} parent=27 // pred_region
        %p211 = scmp.lt.s32.totalorder %s17, 1
        %s212 = scalar_select %p211, %s17, 1
        %p213 = scmp.lt.s32.totalorder %s19, 0
        %s214 = scalar_select %p213, %s19, 0
        %s215 = smul.addr %s212, 2
        %s216 = sadd.s32 %s214, %s215
        %s217 = smul.addr %s216, 4
        %s218 = scalar_lea.vmem %s0, %s217
      $region32: #{critic_forward.3} parent=27 // pred_fallthru
        _
    $region28: #{critic_forward.3} parent=5 // pred_fallthru
      _
    %p219 = scmp.le.s32.totalorder 1, %s10
    %p220 = scmp.lt.s32.totalorder %s10, 3
    %p221 = pnand %p219, %p220
    %p222 = pneg %p221
    // Predicated region
    $region33: #{critic_forward.3} parent=5 // pred_check
      _
    $region34: #{critic_forward.3} parent=5 // pred_check_branch
      %224 = sbr.rel (%p221) target = $region36
    $region35: #{critic_forward.3} parent=5 // pred_region
      %s225 = ssub.s32 %s10, 1
      %p226 = scmp.lt.s32.totalorder %s20, 1
      %s227 = scalar_select %p226, %s20, 1
      %p228 = scmp.lt.s32.totalorder %s22, 0
      %s229 = scalar_select %p228, %s22, 0
      %s230 = smul.addr %s227, 2
      %s231 = sadd.s32 %s229, %s230
      %s232 = smul.addr %s231, 4
      %s233 = scalar_lea.vmem %s0, %s232
      %p234 = pneg %p57
      %p235 = pneg %p54
      %s236 = smul.u32 16, %s22
      %p237 = scmp.lt.s32.totalorder %s236, 15
      %s238 = scalar_select %p237, %s236, 15
      %p239 = scmp.lt.s32.totalorder %s21, 0
      %s240 = scalar_select %p239, %s21, 0
      %s241 = sadd.s32 %s240, %s238
      %s242 = smul.addr %s241, 4
      %s243 = scalar_lea.vmem %s1, %s242
      %p244 = pneg %p85
      %p245 = pneg %p82
      %p246 = scmp.lt.s32.totalorder %s21, 0
      %s247 = scalar_select %p246, %s21, 0
      %s248 = scalar_lea.vmem %s2, %s247
      %p249 = pneg %p111
      %p250 = pneg %p108
      %p251 = scmp.lt.s32.totalorder %s21, 0
      %s252 = scalar_select %p251, %s21, 0
      %s253 = scalar_lea.vmem %s3, %s252
      %p254 = pneg %p137
      %p255 = pneg %p134
      %p256 = pneg %p165
      %p257 = pneg %p162
      %p258 = scmp.lt.s32.totalorder %s20, 1
      %s259 = scalar_select %p258, %s20, 1
      %p260 = scmp.lt.s32.totalorder %s21, 0
      %s261 = scalar_select %p260, %s21, 0
      %s262 = smul.addr %s259, 2
      %s263 = sadd.s32 %s261, %s262
      %s264 = smul.addr %s263, 4
      %s265 = scalar_lea.vmem %s4, %s264
      %p266 = scmp.lt.s32.totalorder %s20, 1
      %s267 = scalar_select %p266, %s20, 1
      %p268 = scmp.lt.s32.totalorder %s22, 0
      %s269 = scalar_select %p268, %s22, 0
      %s270 = smul.addr %s267, 2
      %s271 = sadd.s32 %s269, %s270
      %s272 = smul.addr %s271, 4
      %s273 = scalar_lea.vmem %s0, %s272
      %s274 = smul.u32 16, %s22
      %p275 = scmp.lt.s32.totalorder %s274, 15
      %s276 = scalar_select %p275, %s274, 15
      %p277 = scmp.lt.s32.totalorder %s21, 0
      %s278 = scalar_select %p277, %s21, 0
      %s279 = sadd.s32 %s278, %s276
      %s280 = smul.addr %s279, 4
      %s281 = scalar_lea.vmem %s1, %s280
      %s282 = smul.u32 16, %s22
      %p283 = scmp.lt.s32.totalorder %s21, 0
      %s284 = scalar_select %p283, %s21, 0
      %s285 = scalar_lea.vmem %s2, %s284
      %p286 = scmp.lt.s32.totalorder %s21, 0
      %s287 = scalar_select %p286, %s21, 0
      %s288 = scalar_lea.vmem %s3, %s287
      %p289 = scmp.lt.s32.totalorder %s20, 1
      %s290 = scalar_select %p289, %s20, 1
      %p291 = scmp.lt.s32.totalorder %s21, 0
      %s292 = scalar_select %p291, %s21, 0
      %s293 = smul.addr %s290, 2
      %s294 = sadd.s32 %s292, %s293
      %s295 = smul.addr %s294, 4
      %s296 = scalar_lea.vmem %s4, %s295
      %p298 = scmp.eq.s32.totalorder %s22, 0
      // Predicated region
      $region37: #{critic_forward.3} parent=35 // pred_check
        %p299 = pneg %p298
      $region38: #{critic_forward.3} parent=35 // pred_check_branch
        %301 = sbr.rel (%p299) target = $region40
      $region39: #{critic_forward.3} parent=35 // pred_region
        %vm302 = vcmask 130048
        %303 = vst.msk [vmem:[#allocation2] sm:$0xff] %vm302, 0.0
        %304 = vst.msk [vmem:[#allocation2 + $0x8] sm:$0xff] %vm302, 0.0
      $region40: #{critic_forward.3} parent=35 // pred_fallthru
        _
      %v305 = vld [vmem:[#allocation2] sm:$0xff]
      %v306 = vld [vmem:[#allocation2 + $0x8] sm:$0xff]
      %v307 = vld [vmem:[%s273] sm:$0xf]
      %v308 = vld [vmem:[%s273 + $0x4] sm:$0xf]
      %v309 = vld [vmem:[%s281] sm:$0xf]
      %v310 = vld [vmem:[%s281 + $0x4] sm:$0xf]
      %v311 = vld [vmem:[%s281 + $0x8] sm:$0xf]
      %v312 = vld [vmem:[%s281 + $0xc] sm:$0xf]
      %v313 = vld [vmem:[%s281 + $0x10] sm:$0xf]
      %v314 = vld [vmem:[%s281 + $0x14] sm:$0xf]
      %v315 = vld [vmem:[%s281 + $0x18] sm:$0xf]
      %v316 = vld [vmem:[%s281 + $0x1c] sm:$0xf]
      %v317 = vld [vmem:[%s281 + $0x20] sm:$0xf]
      %v318 = vld [vmem:[%s281 + $0x24] sm:$0xf]
      %v319 = vld [vmem:[%s281 + $0x28] sm:$0xf]
      %v320 = vld [vmem:[%s281 + $0x2c] sm:$0xf]
      %v321 = vld [vmem:[%s281 + $0x30] sm:$0xf]
      %v322 = vld [vmem:[%s281 + $0x34] sm:$0xf]
      %v323 = vld [vmem:[%s281 + $0x38] sm:$0xf]
      %v324 = vld [vmem:[%s281 + $0x3c] sm:$0xf]
      %v327 = vunpack.c.l.b16 %v307
      %v328 = vunpack.c.l.b16 %v308
      %v329 = vpack.c.b16 %v328, %v327
      %v347 = vunpack.c.l.b16 %v309
      %v348 = vunpack.c.l.b16 %v310
      %v349 = vunpack.c.l.b16 %v311
      %v350 = vunpack.c.l.b16 %v312
      %v351 = vunpack.c.l.b16 %v313
      %v352 = vunpack.c.l.b16 %v314
      %v353 = vunpack.c.l.b16 %v315
      %v354 = vunpack.c.l.b16 %v316
      %v355 = vunpack.c.l.b16 %v317
      %v356 = vunpack.c.l.b16 %v318
      %v357 = vunpack.c.l.b16 %v319
      %v358 = vunpack.c.l.b16 %v320
      %v359 = vunpack.c.l.b16 %v321
      %v360 = vunpack.c.l.b16 %v322
      %v361 = vunpack.c.l.b16 %v323
      %v362 = vunpack.c.l.b16 %v324
      %v363 = vpack.c.b16 %v348, %v347
      %v364 = vpack.c.b16 %v350, %v349
      %v365 = vpack.c.b16 %v352, %v351
      %v366 = vpack.c.b16 %v354, %v353
      %v367 = vpack.c.b16 %v356, %v355
      %v368 = vpack.c.b16 %v358, %v357
      %v369 = vpack.c.b16 %v360, %v359
      %v370 = vpack.c.b16 %v362, %v361
      %379 = vmatprep.subr.bf16.mxu0 0
      %380 = vmatpush1.bf16.msra.mxu0 %v363
      %381 = vmatprep.subr.bf16.mxu0 0
      %382 = vmatpush1.bf16.msra.mxu0 %v364
      %383 = vmatprep.subr.bf16.mxu0 0
      %384 = vmatpush1.bf16.msra.mxu0 %v365
      %385 = vmatprep.subr.bf16.mxu0 0
      %386 = vmatpush1.bf16.msra.mxu0 %v366
      %387 = vmatprep.subr.bf16.mxu0 0
      %388 = vmatpush1.bf16.msra.mxu0 %v367
      %389 = vmatprep.subr.bf16.mxu0 0
      %390 = vmatpush1.bf16.msra.mxu0 %v368
      %391 = vmatprep.subr.bf16.mxu0 0
      %392 = vmatpush1.bf16.msra.mxu0 %v369
      %393 = vmatprep.subr.bf16.mxu0 0
      %394 = vmatpush1.bf16.msra.mxu0 %v370
      %395 = vmatprep.subr.bf16.mxu0 0
      %396 = vmatpush1.bf16.msra.mxu0 0
      %397 = vmatprep.subr.bf16.mxu0 0
      %398 = vmatpush1.bf16.msra.mxu0 0
      %399 = vmatprep.subr.bf16.mxu0 0
      %400 = vmatpush1.bf16.msra.mxu0 0
      %401 = vmatprep.subr.bf16.mxu0 0
      %402 = vmatpush1.bf16.msra.mxu0 0
      %403 = vmatprep.subr.bf16.mxu0 0
      %404 = vmatpush1.bf16.msra.mxu0 0
      %405 = vmatprep.subr.bf16.mxu0 0
      %406 = vmatpush1.bf16.msra.mxu0 0
      %407 = vmatprep.subr.bf16.mxu0 0
      %408 = vmatpush1.bf16.msra.mxu0 0
      %409 = vmatprep.subr.bf16.mxu0 0
      %410 = vmatpush1.bf16.msra.mxu0 0
      %411 = vmatprep.mubr.bf16.mxu0 0
      %412 = vmatmul.mubr.bf16.gmra.mrb[0].mxu0 %v329
      %v413 = vpop.f32.mrb[0].mxu0
      %v414 = vadd.f32 0.0, %v413
      %v415 = vpop.f32.mrb[0].mxu0
      %v416 = vpop.f32.mrb[0].mxu0
      %v417 = vadd.f32 0.0, %v416
      %v418 = vpop.f32.mrb[0].mxu0
      %419 = vdwg.mxu0
      %v420 = vadd.f32 %v305, %v414
      %v421 = vadd.f32 %v306, %v417
      %vm422 = vcmask 130048
      %423 = vst.msk [vmem:[#allocation2] sm:$0xff] %vm422, %v420
      %424 = vst.msk [vmem:[#allocation2 + $0x8] sm:$0xff] %vm422, %v421
      // Predicated region
      $region41: #{critic_forward.3} parent=35 // pred_check
        %p425 = pneg %p298
      $region42: #{critic_forward.3} parent=35 // pred_check_branch
        %427 = sbr.rel (%p425) target = $region44
      $region43: #{critic_forward.3} parent=35 // pred_region
        %v428 = vld [vmem:[%s285] sm:$0x1]
        %v429 = vld [vmem:[%s288] sm:$0x1]
        %v430 = vld [vmem:[#allocation2] sm:$0xff]
        %v431 = vld [vmem:[#allocation2 + $0x8] sm:$0xff]
        %v432 = vsel %vm422, %v430, 0.0
        %v433 = vsel %vm422, %v431, 0.0
        %v434 = vadd.f32 %v432, %v433
        %v435 = vrot.slane %v434, 4
        %v436 = vadd.f32 %v434, %v435
        %v437 = vrot.slane %v436, 2
        %v438 = vadd.f32 %v436, %v437
        %v439 = vrot.slane %v438, 1
        %v440 = vadd.f32 %v438, %v439
        %v441 = vadd.f32 %v440, 0.0
        %v442 = vmul.f32 %v430, %v430
        %v443 = vmul.f32 %v431, %v431
        %v444 = vsel %vm422, %v442, 0.0
        %v445 = vsel %vm422, %v443, 0.0
        %v446 = vadd.f32 %v444, %v445
        %v447 = vrot.slane %v446, 4
        %v448 = vadd.f32 %v446, %v447
        %v449 = vrot.slane %v448, 2
        %v450 = vadd.f32 %v448, %v449
        %v451 = vrot.slane %v450, 1
        %v452 = vadd.f32 %v450, %v451
        %v453 = vadd.f32 %v452, 0.0
        %v454 = vmul.f32 %v441, 0.0625
        %v455 = vmul.f32 %v453, 0.0625
        %v456 = vmul.f32 %v454, %v454
        %v457 = vsub.f32 %v455, %v456
        %v458 = vmax.f32 %v457, 0.0
        %v459 = vadd.f32 %v458, 1e-05
        %v460 = vrsqrt.pop %v459
        %v461 = vmul.f32 %v460, %v428
        %v462 = vmul.f32 %v454, %v461
        %v463 = vsub.f32 %v429, %v462
        %v464 = vlaneseq
        %v465 = vshrl.u32 %v464, 7
        %v466 = vsub.s32 0, %v465
        %v467 = vrot.slane %v461, %v466
        %v468 = vmul.f32 %v430, %v467
        %v469 = vmul.f32 %v431, %v467
        %v471 = vlaneseq
        %v472 = vshrl.u32 %v471, 7
        %v473 = vsub.s32 0, %v472
        %v474 = vrot.slane %v463, %v473
        %v476 = vadd.f32 %v468, %v474
        %v477 = vadd.f32 %v469, %v474
        %vm478 = vcmp.gt.f32.partialorder %v476, 0.0
        %vm479 = vcmp.gt.f32.partialorder %v477, 0.0
        %v480 = vmul.f32 %v476, 0.2
        %v481 = vmul.f32 %v477, 0.2
        %v482 = vsel %vm478, %v476, %v480
        %v483 = vsel %vm479, %v477, %v481
        %v484 = vpack.c.bf16 %v483, %v482
        %v486 = vunpack.c.l.b16 %v484
        %v487 = vunpack.c.h.b16 %v484
        %v488 = vpack.c.b16 %v486, %v486
        %v489 = vpack.c.b16 %v487, %v487
        %vm492 = vcmask 125952
        %493 = vst.msk [vmem:[%s296] sm:$0xf] %vm492, %v488
        %494 = vst.msk [vmem:[%s296 + $0x4] sm:$0xf] %vm492, %v489
      $region44: #{critic_forward.3} parent=35 // pred_fallthru
        _
      %p495 = scmp.lt.s32.totalorder %s20, 1
      %s496 = scalar_select %p495, %s20, 1
      %p497 = scmp.lt.s32.totalorder %s21, 0
      %s498 = scalar_select %p497, %s21, 0
      %s499 = smul.addr %s496, 2
      %s500 = sadd.s32 %s498, %s499
      %s501 = smul.addr %s500, 4
      %s502 = scalar_lea.vmem %s4, %s501
      // Predicated region
      $region45: #{critic_forward.3} parent=35 // pred_check
        %p503 = pneg %p162
      $region46: #{critic_forward.3} parent=35 // pred_check_branch
        %505 = sbr.rel (%p503) target = $region48
      $region47: #{critic_forward.3} parent=35 // pred_region
        _
      $region48: #{critic_forward.3} parent=35 // pred_fallthru
        _
    $region36: #{critic_forward.3} parent=5 // pred_fallthru
      _
    %p506 = scmp.le.s32.totalorder 2, %s10
    // Predicated region
    $region49: #{critic_forward.3} parent=5 // pred_check
      %p507 = pneg %p506
    $region50: #{critic_forward.3} parent=5 // pred_check_branch
      %509 = sbr.rel (%p507) target = $region52
    $region51: #{critic_forward.3} parent=5 // pred_region
      %s510 = ssub.s32 %s10, 2
      // Predicated region
      $region53: #{critic_forward.3} parent=51 // pred_check
        %p511 = pneg %p168
      $region54: #{critic_forward.3} parent=51 // pred_check_branch
        %513 = sbr.rel (%p511) target = $region56
      $region55: #{critic_forward.3} parent=51 // pred_region
        %p514 = scmp.lt.s32.totalorder %s23, 1
        %s515 = scalar_select %p514, %s23, 1
        %p516 = scmp.lt.s32.totalorder %s24, 0
        %s517 = scalar_select %p516, %s24, 0
        %s518 = smul.addr %s515, 2
        %s519 = sadd.s32 %s517, %s518
        %s520 = smul.addr %s519, 4
        %s521 = scalar_lea.vmem %s4, %s520
      $region56: #{critic_forward.3} parent=51 // pred_fallthru
        _
    $region52: #{critic_forward.3} parent=5 // pred_fallthru
      _
  $region6: #{critic_forward.3} parent=0 // loop_footer
    %s14 = sadd.s32 1, %s10
  $region7: #{critic_forward.3} parent=0 // loop_footer_branch
    %9 = sbr.rel target = $region3
  $region8: #{critic_forward.3} parent=0 // loop_exit
    _

</llo_original>
